<compile_context>
chip_gen: v7x
topology: tpu7x:2x2x1
jax: 0.10.0
libtpu: 0.0.40
codegen_flags: <defaults>
</compile_context>

<pallas_src>
import jax
import jax.numpy as jnp
from jax.experimental import pallas as pl
from jax.experimental.pallas import tpu as pltpu


def _sigmoid(v):
    # tanh-form sigmoid: transcendental stays on the EUP, no divide sequence
    # on the VPU; matches jax.nn.sigmoid well inside 1e-5.
    return 0.5 * jnp.tanh(0.5 * v) + 0.5


def _conv1x1p1_sigmoid_add_kernel(x_ref, wb_ref, other_ref, o_ref, xp_ref):
    """Single-invocation kernel (no grid); every block is the whole array.

    x_ref:     (N, Cin, H,  W )    f32 VMEM  conv input
    wb_ref:    (Cout, Cin+1)       f32 SMEM  wb[:, :Cin] = weight, wb[:, Cin] = bias
    other_ref: (N, Cout, H+2, W+2) f32 VMEM  residual; HBM buffer aliased with o_ref
    o_ref:     (N, Cout, H+2, W+2) f32 VMEM  output
    xp_ref:    (N, Cin, H+2, W+2)  f32 VMEM  scratch: spatially padded x
    """
    n, cin, h, w = x_ref.shape
    _, cout, ho, wo = o_ref.shape

    # The conv's padding=1, done in VMEM instead of as an XLA pad around the
    # kernel: zero the scratch, then drop x into its interior window.
    xp_ref[...] = jnp.zeros_like(xp_ref)
    xp_ref[:, :, pl.ds(1, h), pl.ds(1, w)] = x_ref[...]
    xp = xp_ref[...]                       # (N, Cin, Ho, Wo)
    other = other_ref[...]                 # read before any output store

    # A 1x1 conv over the padded grid is, per output channel, a 4-term scalar
    # FMA chain (Cout=9, Cin=4; statically unrolled).  Weights/bias are scalar
    # SMEM reads -> scalar-broadcast VPU multiplies; the matmul is far too
    # small to amortize MXU fill/drain latency.
    for o in range(cout):
        acc = jnp.full((n, ho, wo), wb_ref[o, cin], dtype=jnp.float32)   # bias
        for c in range(cin):
            acc = acc + wb_ref[o, c] * xp[:, c, :, :]
        # Border pixels saw only zero-padded x, so they correctly end up as
        # sigmoid(bias) + other, matching torch.
        o_ref[:, o, :, :] = _sigmoid(acc) + other[:, o, :, :]


def conv1x1_pad1_sigmoid_add(x, wb, other):
    """x: (N,Cin,H,W) f32; wb: (Cout,Cin+1) f32 with bias folded into the last
    column; other: (N,Cout,H+2,W+2) f32.  Returns sigmoid(conv(x)) + other."""
    # TODO(synk): torch's `other=None` path draws torch.randn(v1.shape) at
    # forward time; there is no in-kernel equivalent of that host-side default,
    # so `other` must be passed explicitly (generated in the harness).
    n, cin, h, w = x.shape
    cout = wb.shape[0]
    ho, wo = h + 2, w + 2
    return pl.pallas_call(
        _conv1x1p1_sigmoid_add_kernel,
        out_shape=jax.ShapeDtypeStruct((n, cout, ho, wo), jnp.float32),
        in_specs=[
            pl.BlockSpec(memory_space=pltpu.MemorySpace.VMEM),   # x (whole array)
            pl.BlockSpec(memory_space=pltpu.MemorySpace.SMEM),   # wb (scalar table)
            pl.BlockSpec(memory_space=pltpu.MemorySpace.VMEM),   # other (whole array)
        ],
        out_specs=pl.BlockSpec(memory_space=pltpu.MemorySpace.VMEM),
        scratch_shapes=[pltpu.VMEM((n, cin, ho, wo), jnp.float32)],
        # `other` has the same shape/dtype as the output and is fully
        # overwritten: reuse its HBM buffer.
        input_output_aliases={2: 0},
    )(x, wb, other)


# Donating `other` lets XLA honor the declared alias without a defensive copy.
conv1x1_pad1_sigmoid_add_jit = jax.jit(conv1x1_pad1_sigmoid_add, donate_argnums=(2,))


if __name__ == "__main__":
    key = jax.random.PRNGKey(0)
    k_x, k_w, k_b, k_o = jax.random.split(key, 4)

    # Small shapes consistent with the module: Cin=4 -> Cout=9, 1x1 conv, pad=1.
    N, CIN, H, W = 2, 4, 16, 16
    COUT = 9
    HO, WO = H + 2, W + 2

    x1 = jax.random.normal(k_x, (N, CIN, H, W), dtype=jnp.float32)
    # PyTorch Conv2d default init: U(-1/sqrt(fan_in), 1/sqrt(fan_in)), fan_in=Cin.
    bound = 1.0 / jnp.sqrt(jnp.float32(CIN))
    weight = jax.random.uniform(k_w, (COUT, CIN), minval=-bound, maxval=bound, dtype=jnp.float32)
    bias = jax.random.uniform(k_b, (COUT,), minval=-bound, maxval=bound, dtype=jnp.float32)
    other = jax.random.normal(k_o, (N, COUT, HO, WO), dtype=jnp.float32)

    # Bias folded into the weight slab once, outside the jitted call, so the
    # jitted computation is exactly one custom call.
    wb = jnp.concatenate([weight, bias[:, None]], axis=1)    # (COUT, CIN+1)

    # Reference in plain JAX (computed BEFORE the kernel call since `other` is donated).
    x_pad = jnp.pad(x1, ((0, 0), (0, 0), (1, 1), (1, 1)))
    v1_ref = jnp.einsum("oc,nchw->nohw", weight, x_pad,
                        precision=jax.lax.Precision.HIGHEST) + bias[None, :, None, None]
    ref = jax.nn.sigmoid(v1_ref) + other
    ref = jax.block_until_ready(ref)

    out = conv1x1_pad1_sigmoid_add_jit(x1, wb, other)
    out = jax.block_until_ready(out)

    assert out.shape == (N, COUT, HO, WO), out.shape
    assert jnp.allclose(out, ref, atol=1e-5, rtol=1e-5), float(jnp.max(jnp.abs(out - ref)))

    print("KERNEL_OK")
</pallas_src>

<mosaic_0001>
module attributes {stable_mosaic.version = 11 : i64} {
  func.func @_conv1x1p1_sigmoid_add_kernel(%arg0: memref<2x4x16x16xf32, #tpu.memory_space<vmem>>, %arg1: memref<9x5xf32, #tpu.memory_space<smem>>, %arg2: memref<2x9x18x18xf32, #tpu.memory_space<vmem>>, %arg3: memref<2x9x18x18xf32, #tpu.memory_space<vmem>>, %arg4: memref<2x4x18x18xf32, #tpu.memory_space<vmem>>) attributes {dimension_semantics = [], scalar_prefetch = 0 : i64, scratch_operands = 1 : i64, tpu.core_type = #tpu.core_type<tc>} {
    %cst = arith.constant 0.000000e+00 : f32
    %0 = vector.broadcast %cst : f32 to vector<2x4x18x18xf32>
    %c0 = arith.constant 0 : index
    %c0_0 = arith.constant 0 : index
    %c0_1 = arith.constant 0 : index
    %c0_2 = arith.constant 0 : index
    %1 = vector.load %arg4[%c0, %c0_0, %c0_1, %c0_2] : memref<2x4x18x18xf32, #tpu.memory_space<vmem>>, vector<2x4x18x18xf32>
    tpu.vector_store %arg4[%c0, %c0_0, %c0_1, %c0_2], %0 {strides = array<i32>} : memref<2x4x18x18xf32, #tpu.memory_space<vmem>>, vector<2x4x18x18xf32>,
    %c0_3 = arith.constant 0 : index
    %c0_4 = arith.constant 0 : index
    %c0_5 = arith.constant 0 : index
    %c0_6 = arith.constant 0 : index
    %2 = vector.load %arg0[%c0_3, %c0_4, %c0_5, %c0_6] : memref<2x4x16x16xf32, #tpu.memory_space<vmem>>, vector<2x4x16x16xf32>
    %c0_7 = arith.constant 0 : index
    %c0_8 = arith.constant 0 : index
    %c1 = arith.constant 1 : index
    %c1_9 = arith.constant 1 : index
    %3 = vector.load %arg4[%c0_7, %c0_8, %c1, %c1_9] : memref<2x4x18x18xf32, #tpu.memory_space<vmem>>, vector<2x4x16x16xf32>
    tpu.vector_store %arg4[%c0_7, %c0_8, %c1, %c1_9], %2 {strides = array<i32>} : memref<2x4x18x18xf32, #tpu.memory_space<vmem>>, vector<2x4x16x16xf32>,
    %c0_10 = arith.constant 0 : index
    %c0_11 = arith.constant 0 : index
    %c0_12 = arith.constant 0 : index
    %c0_13 = arith.constant 0 : index
    %4 = vector.load %arg4[%c0_10, %c0_11, %c0_12, %c0_13] : memref<2x4x18x18xf32, #tpu.memory_space<vmem>>, vector<2x4x18x18xf32>
    %c0_14 = arith.constant 0 : index
    %c0_15 = arith.constant 0 : index
    %c0_16 = arith.constant 0 : index
    %c0_17 = arith.constant 0 : index
    %5 = vector.load %arg2[%c0_14, %c0_15, %c0_16, %c0_17] : memref<2x9x18x18xf32, #tpu.memory_space<vmem>>, vector<2x9x18x18xf32>
    %c0_18 = arith.constant 0 : index
    %c4 = arith.constant 4 : index
    %6 = memref.load %arg1[%c0_18, %c4] : memref<9x5xf32, #tpu.memory_space<smem>>
    %7 = vector.broadcast %6 : f32 to vector<2x18x18xf32>
    %c0_19 = arith.constant 0 : index
    %c0_20 = arith.constant 0 : index
    %8 = memref.load %arg1[%c0_19, %c0_20] : memref<9x5xf32, #tpu.memory_space<smem>>
    %9 = vector.extract_strided_slice %4 {offsets = [0, 0, 0, 0], sizes = [2, 1, 18, 18], strides = [1, 1, 1, 1]} : vector<2x4x18x18xf32> to vector<2x1x18x18xf32>
    %10 = vector.shape_cast %9 : vector<2x1x18x18xf32> to vector<2x18x18xf32>
    %11 = vector.broadcast %8 : f32 to vector<2x18x18xf32>
    %12 = arith.mulf %11, %10 : vector<2x18x18xf32>
    %13 = arith.addf %7, %12 : vector<2x18x18xf32>
    %c0_21 = arith.constant 0 : index
    %c1_22 = arith.constant 1 : index
    %14 = memref.load %arg1[%c0_21, %c1_22] : memref<9x5xf32, #tpu.memory_space<smem>>
    %15 = vector.extract_strided_slice %4 {offsets = [0, 1, 0, 0], sizes = [2, 1, 18, 18], strides = [1, 1, 1, 1]} : vector<2x4x18x18xf32> to vector<2x1x18x18xf32>
    %16 = vector.shape_cast %15 : vector<2x1x18x18xf32> to vector<2x18x18xf32>
    %17 = vector.broadcast %14 : f32 to vector<2x18x18xf32>
    %18 = arith.mulf %17, %16 : vector<2x18x18xf32>
    %19 = arith.addf %13, %18 : vector<2x18x18xf32>
    %c0_23 = arith.constant 0 : index
    %c2 = arith.constant 2 : index
    %20 = memref.load %arg1[%c0_23, %c2] : memref<9x5xf32, #tpu.memory_space<smem>>
    %21 = vector.extract_strided_slice %4 {offsets = [0, 2, 0, 0], sizes = [2, 1, 18, 18], strides = [1, 1, 1, 1]} : vector<2x4x18x18xf32> to vector<2x1x18x18xf32>
    %22 = vector.shape_cast %21 : vector<2x1x18x18xf32> to vector<2x18x18xf32>
    %23 = vector.broadcast %20 : f32 to vector<2x18x18xf32>
    %24 = arith.mulf %23, %22 : vector<2x18x18xf32>
    %25 = arith.addf %19, %24 : vector<2x18x18xf32>
    %c0_24 = arith.constant 0 : index
    %c3 = arith.constant 3 : index
    %26 = memref.load %arg1[%c0_24, %c3] : memref<9x5xf32, #tpu.memory_space<smem>>
    %27 = vector.extract_strided_slice %4 {offsets = [0, 3, 0, 0], sizes = [2, 1, 18, 18], strides = [1, 1, 1, 1]} : vector<2x4x18x18xf32> to vector<2x1x18x18xf32>
    %28 = vector.shape_cast %27 : vector<2x1x18x18xf32> to vector<2x18x18xf32>
    %29 = vector.broadcast %26 : f32 to vector<2x18x18xf32>
    %30 = arith.mulf %29, %28 : vector<2x18x18xf32>
    %31 = arith.addf %25, %30 : vector<2x18x18xf32>
    %cst_25 = arith.constant 5.000000e-01 : f32
    %32 = vector.broadcast %cst_25 : f32 to vector<2x18x18xf32>
    %33 = arith.mulf %32, %31 : vector<2x18x18xf32>
    %34 = math.tanh %33 : vector<2x18x18xf32>
    %cst_26 = arith.constant 5.000000e-01 : f32
    %35 = vector.broadcast %cst_26 : f32 to vector<2x18x18xf32>
    %36 = arith.mulf %35, %34 : vector<2x18x18xf32>
    %cst_27 = arith.constant 5.000000e-01 : f32
    %37 = vector.broadcast %cst_27 : f32 to vector<2x18x18xf32>
    %38 = arith.addf %36, %37 : vector<2x18x18xf32>
    %39 = vector.extract_strided_slice %5 {offsets = [0, 0, 0, 0], sizes = [2, 1, 18, 18], strides = [1, 1, 1, 1]} : vector<2x9x18x18xf32> to vector<2x1x18x18xf32>
    %40 = vector.shape_cast %39 : vector<2x1x18x18xf32> to vector<2x18x18xf32>
    %41 = arith.addf %38, %40 : vector<2x18x18xf32>
    %c0_28 = arith.constant 0 : index
    %c0_29 = arith.constant 0 : index
    %c0_30 = arith.constant 0 : index
    %c0_31 = arith.constant 0 : index
    %42 = vector.load %arg3[%c0_28, %c0_29, %c0_30, %c0_31] : memref<2x9x18x18xf32, #tpu.memory_space<vmem>>, vector<2x1x18x18xf32>
    %43 = vector.shape_cast %42 : vector<2x1x18x18xf32> to vector<2x18x18xf32>
    %44 = vector.shape_cast %41 : vector<2x18x18xf32> to vector<2x1x18x18xf32>
    tpu.vector_store %arg3[%c0_28, %c0_29, %c0_30, %c0_31], %44 {strides = array<i32>} : memref<2x9x18x18xf32, #tpu.memory_space<vmem>>, vector<2x1x18x18xf32>,
    %c1_32 = arith.constant 1 : index
    %c4_33 = arith.constant 4 : index
    %45 = memref.load %arg1[%c1_32, %c4_33] : memref<9x5xf32, #tpu.memory_space<smem>>
    %46 = vector.broadcast %45 : f32 to vector<2x18x18xf32>
    %c1_34 = arith.constant 1 : index
    %c0_35 = arith.constant 0 : index
    %47 = memref.load %arg1[%c1_34, %c0_35] : memref<9x5xf32, #tpu.memory_space<smem>>
    %48 = vector.extract_strided_slice %4 {offsets = [0, 0, 0, 0], sizes = [2, 1, 18, 18], strides = [1, 1, 1, 1]} : vector<2x4x18x18xf32> to vector<2x1x18x18xf32>
    %49 = vector.shape_cast %48 : vector<2x1x18x18xf32> to vector<2x18x18xf32>
    %50 = vector.broadcast %47 : f32 to vector<2x18x18xf32>
    %51 = arith.mulf %50, %49 : vector<2x18x18xf32>
    %52 = arith.addf %46, %51 : vector<2x18x18xf32>
    %c1_36 = arith.constant 1 : index
    %c1_37 = arith.constant 1 : index
    %53 = memref.load %arg1[%c1_36, %c1_37] : memref<9x5xf32, #tpu.memory_space<smem>>
    %54 = vector.extract_strided_slice %4 {offsets = [0, 1, 0, 0], sizes = [2, 1, 18, 18], strides = [1, 1, 1, 1]} : vector<2x4x18x18xf32> to vector<2x1x18x18xf32>
    %55 = vector.shape_cast %54 : vector<2x1x18x18xf32> to vector<2x18x18xf32>
    %56 = vector.broadcast %53 : f32 to vector<2x18x18xf32>
    %57 = arith.mulf %56, %55 : vector<2x18x18xf32>
    %58 = arith.addf %52, %57 : vector<2x18x18xf32>
    %c1_38 = arith.constant 1 : index
    %c2_39 = arith.constant 2 : index
    %59 = memref.load %arg1[%c1_38, %c2_39] : memref<9x5xf32, #tpu.memory_space<smem>>
    %60 = vector.extract_strided_slice %4 {offsets = [0, 2, 0, 0], sizes = [2, 1, 18, 18], strides = [1, 1, 1, 1]} : vector<2x4x18x18xf32> to vector<2x1x18x18xf32>
    %61 = vector.shape_cast %60 : vector<2x1x18x18xf32> to vector<2x18x18xf32>
    %62 = vector.broadcast %59 : f32 to vector<2x18x18xf32>
    %63 = arith.mulf %62, %61 : vector<2x18x18xf32>
    %64 = arith.addf %58, %63 : vector<2x18x18xf32>
    %c1_40 = arith.constant 1 : index
    %c3_41 = arith.constant 3 : index
    %65 = memref.load %arg1[%c1_40, %c3_41] : memref<9x5xf32, #tpu.memory_space<smem>>
    %66 = vector.extract_strided_slice %4 {offsets = [0, 3, 0, 0], sizes = [2, 1, 18, 18], strides = [1, 1, 1, 1]} : vector<2x4x18x18xf32> to vector<2x1x18x18xf32>
    %67 = vector.shape_cast %66 : vector<2x1x18x18xf32> to vector<2x18x18xf32>
    %68 = vector.broadcast %65 : f32 to vector<2x18x18xf32>
    %69 = arith.mulf %68, %67 : vector<2x18x18xf32>
    %70 = arith.addf %64, %69 : vector<2x18x18xf32>
    %cst_42 = arith.constant 5.000000e-01 : f32
    %71 = vector.broadcast %cst_42 : f32 to vector<2x18x18xf32>
    %72 = arith.mulf %71, %70 : vector<2x18x18xf32>
    %73 = math.tanh %72 : vector<2x18x18xf32>
    %cst_43 = arith.constant 5.000000e-01 : f32
    %74 = vector.broadcast %cst_43 : f32 to vector<2x18x18xf32>
    %75 = arith.mulf %74, %73 : vector<2x18x18xf32>
    %cst_44 = arith.constant 5.000000e-01 : f32
    %76 = vector.broadcast %cst_44 : f32 to vector<2x18x18xf32>
    %77 = arith.addf %75, %76 : vector<2x18x18xf32>
    %78 = vector.extract_strided_slice %5 {offsets = [0, 1, 0, 0], sizes = [2, 1, 18, 18], strides = [1, 1, 1, 1]} : vector<2x9x18x18xf32> to vector<2x1x18x18xf32>
    %79 = vector.shape_cast %78 : vector<2x1x18x18xf32> to vector<2x18x18xf32>
    %80 = arith.addf %77, %79 : vector<2x18x18xf32>
    %c0_45 = arith.constant 0 : index
    %c1_46 = arith.constant 1 : index
    %c0_47 = arith.constant 0 : index
    %c0_48 = arith.constant 0 : index
    %81 = vector.load %arg3[%c0_45, %c1_46, %c0_47, %c0_48] : memref<2x9x18x18xf32, #tpu.memory_space<vmem>>, vector<2x1x18x18xf32>
    %82 = vector.shape_cast %81 : vector<2x1x18x18xf32> to vector<2x18x18xf32>
    %83 = vector.shape_cast %80 : vector<2x18x18xf32> to vector<2x1x18x18xf32>
    tpu.vector_store %arg3[%c0_45, %c1_46, %c0_47, %c0_48], %83 {strides = array<i32>} : memref<2x9x18x18xf32, #tpu.memory_space<vmem>>, vector<2x1x18x18xf32>,
    %c2_49 = arith.constant 2 : index
    %c4_50 = arith.constant 4 : index
    %84 = memref.load %arg1[%c2_49, %c4_50] : memref<9x5xf32, #tpu.memory_space<smem>>
    %85 = vector.broadcast %84 : f32 to vector<2x18x18xf32>
    %c2_51 = arith.constant 2 : index
    %c0_52 = arith.constant 0 : index
    %86 = memref.load %arg1[%c2_51, %c0_52] : memref<9x5xf32, #tpu.memory_space<smem>>
    %87 = vector.extract_strided_slice %4 {offsets = [0, 0, 0, 0], sizes = [2, 1, 18, 18], strides = [1, 1, 1, 1]} : vector<2x4x18x18xf32> to vector<2x1x18x18xf32>
    %88 = vector.shape_cast %87 : vector<2x1x18x18xf32> to vector<2x18x18xf32>
    %89 = vector.broadcast %86 : f32 to vector<2x18x18xf32>
    %90 = arith.mulf %89, %88 : vector<2x18x18xf32>
    %91 = arith.addf %85, %90 : vector<2x18x18xf32>
    %c2_53 = arith.constant 2 : index
    %c1_54 = arith.constant 1 : index
    %92 = memref.load %arg1[%c2_53, %c1_54] : memref<9x5xf32, #tpu.memory_space<smem>>
    %93 = vector.extract_strided_slice %4 {offsets = [0, 1, 0, 0], sizes = [2, 1, 18, 18], strides = [1, 1, 1, 1]} : vector<2x4x18x18xf32> to vector<2x1x18x18xf32>
    %94 = vector.shape_cast %93 : vector<2x1x18x18xf32> to vector<2x18x18xf32>
    %95 = vector.broadcast %92 : f32 to vector<2x18x18xf32>
    %96 = arith.mulf %95, %94 : vector<2x18x18xf32>
    %97 = arith.addf %91, %96 : vector<2x18x18xf32>
    %c2_55 = arith.constant 2 : index
    %c2_56 = arith.constant 2 : index
    %98 = memref.load %arg1[%c2_55, %c2_56] : memref<9x5xf32, #tpu.memory_space<smem>>
    %99 = vector.extract_strided_slice %4 {offsets = [0, 2, 0, 0], sizes = [2, 1, 18, 18], strides = [1, 1, 1, 1]} : vector<2x4x18x18xf32> to vector<2x1x18x18xf32>
    %100 = vector.shape_cast %99 : vector<2x1x18x18xf32> to vector<2x18x18xf32>
    %101 = vector.broadcast %98 : f32 to vector<2x18x18xf32>
    %102 = arith.mulf %101, %100 : vector<2x18x18xf32>
    %103 = arith.addf %97, %102 : vector<2x18x18xf32>
    %c2_57 = arith.constant 2 : index
    %c3_58 = arith.constant 3 : index
    %104 = memref.load %arg1[%c2_57, %c3_58] : memref<9x5xf32, #tpu.memory_space<smem>>
    %105 = vector.extract_strided_slice %4 {offsets = [0, 3, 0, 0], sizes = [2, 1, 18, 18], strides = [1, 1, 1, 1]} : vector<2x4x18x18xf32> to vector<2x1x18x18xf32>
    %106 = vector.shape_cast %105 : vector<2x1x18x18xf32> to vector<2x18x18xf32>
    %107 = vector.broadcast %104 : f32 to vector<2x18x18xf32>
    %108 = arith.mulf %107, %106 : vector<2x18x18xf32>
    %109 = arith.addf %103, %108 : vector<2x18x18xf32>
    %cst_59 = arith.constant 5.000000e-01 : f32
    %110 = vector.broadcast %cst_59 : f32 to vector<2x18x18xf32>
    %111 = arith.mulf %110, %109 : vector<2x18x18xf32>
    %112 = math.tanh %111 : vector<2x18x18xf32>
    %cst_60 = arith.constant 5.000000e-01 : f32
    %113 = vector.broadcast %cst_60 : f32 to vector<2x18x18xf32>
    %114 = arith.mulf %113, %112 : vector<2x18x18xf32>
    %cst_61 = arith.constant 5.000000e-01 : f32
    %115 = vector.broadcast %cst_61 : f32 to vector<2x18x18xf32>
    %116 = arith.addf %114, %115 : vector<2x18x18xf32>
    %117 = vector.extract_strided_slice %5 {offsets = [0, 2, 0, 0], sizes = [2, 1, 18, 18], strides = [1, 1, 1, 1]} : vector<2x9x18x18xf32> to vector<2x1x18x18xf32>
    %118 = vector.shape_cast %117 : vector<2x1x18x18xf32> to vector<2x18x18xf32>
    %119 = arith.addf %116, %118 : vector<2x18x18xf32>
    %c0_62 = arith.constant 0 : index
    %c2_63 = arith.constant 2 : index
    %c0_64 = arith.constant 0 : index
    %c0_65 = arith.constant 0 : index
    %120 = vector.load %arg3[%c0_62, %c2_63, %c0_64, %c0_65] : memref<2x9x18x18xf32, #tpu.memory_space<vmem>>, vector<2x1x18x18xf32>
    %121 = vector.shape_cast %120 : vector<2x1x18x18xf32> to vector<2x18x18xf32>
    %122 = vector.shape_cast %119 : vector<2x18x18xf32> to vector<2x1x18x18xf32>
    tpu.vector_store %arg3[%c0_62, %c2_63, %c0_64, %c0_65], %122 {strides = array<i32>} : memref<2x9x18x18xf32, #tpu.memory_space<vmem>>, vector<2x1x18x18xf32>,
    %c3_66 = arith.constant 3 : index
    %c4_67 = arith.constant 4 : index
    %123 = memref.load %arg1[%c3_66, %c4_67] : memref<9x5xf32, #tpu.memory_space<smem>>
    %124 = vector.broadcast %123 : f32 to vector<2x18x18xf32>
    %c3_68 = arith.constant 3 : index
    %c0_69 = arith.constant 0 : index
    %125 = memref.load %arg1[%c3_68, %c0_69] : memref<9x5xf32, #tpu.memory_space<smem>>
    %126 = vector.extract_strided_slice %4 {offsets = [0, 0, 0, 0], sizes = [2, 1, 18, 18], strides = [1, 1, 1, 1]} : vector<2x4x18x18xf32> to vector<2x1x18x18xf32>
    %127 = vector.shape_cast %126 : vector<2x1x18x18xf32> to vector<2x18x18xf32>
    %128 = vector.broadcast %125 : f32 to vector<2x18x18xf32>
    %129 = arith.mulf %128, %127 : vector<2x18x18xf32>
    %130 = arith.addf %124, %129 : vector<2x18x18xf32>
    %c3_70 = arith.constant 3 : index
    %c1_71 = arith.constant 1 : index
    %131 = memref.load %arg1[%c3_70, %c1_71] : memref<9x5xf32, #tpu.memory_space<smem>>
    %132 = vector.extract_strided_slice %4 {offsets = [0, 1, 0, 0], sizes = [2, 1, 18, 18], strides = [1, 1, 1, 1]} : vector<2x4x18x18xf32> to vector<2x1x18x18xf32>
    %133 = vector.shape_cast %132 : vector<2x1x18x18xf32> to vector<2x18x18xf32>
    %134 = vector.broadcast %131 : f32 to vector<2x18x18xf32>
    %135 = arith.mulf %134, %133 : vector<2x18x18xf32>
    %136 = arith.addf %130, %135 : vector<2x18x18xf32>
    %c3_72 = arith.constant 3 : index
    %c2_73 = arith.constant 2 : index
    %137 = memref.load %arg1[%c3_72, %c2_73] : memref<9x5xf32, #tpu.memory_space<smem>>
    %138 = vector.extract_strided_slice %4 {offsets = [0, 2, 0, 0], sizes = [2, 1, 18, 18], strides = [1, 1, 1, 1]} : vector<2x4x18x18xf32> to vector<2x1x18x18xf32>
    %139 = vector.shape_cast %138 : vector<2x1x18x18xf32> to vector<2x18x18xf32>
    %140 = vector.broadcast %137 : f32 to vector<2x18x18xf32>
    %141 = arith.mulf %140, %139 : vector<2x18x18xf32>
    %142 = arith.addf %136, %141 : vector<2x18x18xf32>
    %c3_74 = arith.constant 3 : index
    %c3_75 = arith.constant 3 : index
    %143 = memref.load %arg1[%c3_74, %c3_75] : memref<9x5xf32, #tpu.memory_space<smem>>
    %144 = vector.extract_strided_slice %4 {offsets = [0, 3, 0, 0], sizes = [2, 1, 18, 18], strides = [1, 1, 1, 1]} : vector<2x4x18x18xf32> to vector<2x1x18x18xf32>
    %145 = vector.shape_cast %144 : vector<2x1x18x18xf32> to vector<2x18x18xf32>
    %146 = vector.broadcast %143 : f32 to vector<2x18x18xf32>
    %147 = arith.mulf %146, %145 : vector<2x18x18xf32>
    %148 = arith.addf %142, %147 : vector<2x18x18xf32>
    %cst_76 = arith.constant 5.000000e-01 : f32
    %149 = vector.broadcast %cst_76 : f32 to vector<2x18x18xf32>
    %150 = arith.mulf %149, %148 : vector<2x18x18xf32>
    %151 = math.tanh %150 : vector<2x18x18xf32>
    %cst_77 = arith.constant 5.000000e-01 : f32
    %152 = vector.broadcast %cst_77 : f32 to vector<2x18x18xf32>
    %153 = arith.mulf %152, %151 : vector<2x18x18xf32>
    %cst_78 = arith.constant 5.000000e-01 : f32
    %154 = vector.broadcast %cst_78 : f32 to vector<2x18x18xf32>
    %155 = arith.addf %153, %154 : vector<2x18x18xf32>
    %156 = vector.extract_strided_slice %5 {offsets = [0, 3, 0, 0], sizes = [2, 1, 18, 18], strides = [1, 1, 1, 1]} : vector<2x9x18x18xf32> to vector<2x1x18x18xf32>
    %157 = vector.shape_cast %156 : vector<2x1x18x18xf32> to vector<2x18x18xf32>
    %158 = arith.addf %155, %157 : vector<2x18x18xf32>
    %c0_79 = arith.constant 0 : index
    %c3_80 = arith.constant 3 : index
    %c0_81 = arith.constant 0 : index
    %c0_82 = arith.constant 0 : index
    %159 = vector.load %arg3[%c0_79, %c3_80, %c0_81, %c0_82] : memref<2x9x18x18xf32, #tpu.memory_space<vmem>>, vector<2x1x18x18xf32>
    %160 = vector.shape_cast %159 : vector<2x1x18x18xf32> to vector<2x18x18xf32>
    %161 = vector.shape_cast %158 : vector<2x18x18xf32> to vector<2x1x18x18xf32>
    tpu.vector_store %arg3[%c0_79, %c3_80, %c0_81, %c0_82], %161 {strides = array<i32>} : memref<2x9x18x18xf32, #tpu.memory_space<vmem>>, vector<2x1x18x18xf32>,
    %c4_83 = arith.constant 4 : index
    %c4_84 = arith.constant 4 : index
    %162 = memref.load %arg1[%c4_83, %c4_84] : memref<9x5xf32, #tpu.memory_space<smem>>
    %163 = vector.broadcast %162 : f32 to vector<2x18x18xf32>
    %c4_85 = arith.constant 4 : index
    %c0_86 = arith.constant 0 : index
    %164 = memref.load %arg1[%c4_85, %c0_86] : memref<9x5xf32, #tpu.memory_space<smem>>
    %165 = vector.extract_strided_slice %4 {offsets = [0, 0, 0, 0], sizes = [2, 1, 18, 18], strides = [1, 1, 1, 1]} : vector<2x4x18x18xf32> to vector<2x1x18x18xf32>
    %166 = vector.shape_cast %165 : vector<2x1x18x18xf32> to vector<2x18x18xf32>
    %167 = vector.broadcast %164 : f32 to vector<2x18x18xf32>
    %168 = arith.mulf %167, %166 : vector<2x18x18xf32>
    %169 = arith.addf %163, %168 : vector<2x18x18xf32>
    %c4_87 = arith.constant 4 : index
    %c1_88 = arith.constant 1 : index
    %170 = memref.load %arg1[%c4_87, %c1_88] : memref<9x5xf32, #tpu.memory_space<smem>>
    %171 = vector.extract_strided_slice %4 {offsets = [0, 1, 0, 0], sizes = [2, 1, 18, 18], strides = [1, 1, 1, 1]} : vector<2x4x18x18xf32> to vector<2x1x18x18xf32>
    %172 = vector.shape_cast %171 : vector<2x1x18x18xf32> to vector<2x18x18xf32>
    %173 = vector.broadcast %170 : f32 to vector<2x18x18xf32>
    %174 = arith.mulf %173, %172 : vector<2x18x18xf32>
    %175 = arith.addf %169, %174 : vector<2x18x18xf32>
    %c4_89 = arith.constant 4 : index
    %c2_90 = arith.constant 2 : index
    %176 = memref.load %arg1[%c4_89, %c2_90] : memref<9x5xf32, #tpu.memory_space<smem>>
    %177 = vector.extract_strided_slice %4 {offsets = [0, 2, 0, 0], sizes = [2, 1, 18, 18], strides = [1, 1, 1, 1]} : vector<2x4x18x18xf32> to vector<2x1x18x18xf32>
    %178 = vector.shape_cast %177 : vector<2x1x18x18xf32> to vector<2x18x18xf32>
    %179 = vector.broadcast %176 : f32 to vector<2x18x18xf32>
    %180 = arith.mulf %179, %178 : vector<2x18x18xf32>
    %181 = arith.addf %175, %180 : vector<2x18x18xf32>
    %c4_91 = arith.constant 4 : index
    %c3_92 = arith.constant 3 : index
    %182 = memref.load %arg1[%c4_91, %c3_92] : memref<9x5xf32, #tpu.memory_space<smem>>
    %183 = vector.extract_strided_slice %4 {offsets = [0, 3, 0, 0], sizes = [2, 1, 18, 18], strides = [1, 1, 1, 1]} : vector<2x4x18x18xf32> to vector<2x1x18x18xf32>
    %184 = vector.shape_cast %183 : vector<2x1x18x18xf32> to vector<2x18x18xf32>
    %185 = vector.broadcast %182 : f32 to vector<2x18x18xf32>
    %186 = arith.mulf %185, %184 : vector<2x18x18xf32>
    %187 = arith.addf %181, %186 : vector<2x18x18xf32>
    %cst_93 = arith.constant 5.000000e-01 : f32
    %188 = vector.broadcast %cst_93 : f32 to vector<2x18x18xf32>
    %189 = arith.mulf %188, %187 : vector<2x18x18xf32>
    %190 = math.tanh %189 : vector<2x18x18xf32>
    %cst_94 = arith.constant 5.000000e-01 : f32
    %191 = vector.broadcast %cst_94 : f32 to vector<2x18x18xf32>
    %192 = arith.mulf %191, %190 : vector<2x18x18xf32>
    %cst_95 = arith.constant 5.000000e-01 : f32
    %193 = vector.broadcast %cst_95 : f32 to vector<2x18x18xf32>
    %194 = arith.addf %192, %193 : vector<2x18x18xf32>
    %195 = vector.extract_strided_slice %5 {offsets = [0, 4, 0, 0], sizes = [2, 1, 18, 18], strides = [1, 1, 1, 1]} : vector<2x9x18x18xf32> to vector<2x1x18x18xf32>
    %196 = vector.shape_cast %195 : vector<2x1x18x18xf32> to vector<2x18x18xf32>
    %197 = arith.addf %194, %196 : vector<2x18x18xf32>
    %c0_96 = arith.constant 0 : index
    %c4_97 = arith.constant 4 : index
    %c0_98 = arith.constant 0 : index
    %c0_99 = arith.constant 0 : index
    %198 = vector.load %arg3[%c0_96, %c4_97, %c0_98, %c0_99] : memref<2x9x18x18xf32, #tpu.memory_space<vmem>>, vector<2x1x18x18xf32>
    %199 = vector.shape_cast %198 : vector<2x1x18x18xf32> to vector<2x18x18xf32>
    %200 = vector.shape_cast %197 : vector<2x18x18xf32> to vector<2x1x18x18xf32>
    tpu.vector_store %arg3[%c0_96, %c4_97, %c0_98, %c0_99], %200 {strides = array<i32>} : memref<2x9x18x18xf32, #tpu.memory_space<vmem>>, vector<2x1x18x18xf32>,
    %c5 = arith.constant 5 : index
    %c4_100 = arith.constant 4 : index
    %201 = memref.load %arg1[%c5, %c4_100] : memref<9x5xf32, #tpu.memory_space<smem>>
    %202 = vector.broadcast %201 : f32 to vector<2x18x18xf32>
    %c5_101 = arith.constant 5 : index
    %c0_102 = arith.constant 0 : index
    %203 = memref.load %arg1[%c5_101, %c0_102] : memref<9x5xf32, #tpu.memory_space<smem>>
    %204 = vector.extract_strided_slice %4 {offsets = [0, 0, 0, 0], sizes = [2, 1, 18, 18], strides = [1, 1, 1, 1]} : vector<2x4x18x18xf32> to vector<2x1x18x18xf32>
    %205 = vector.shape_cast %204 : vector<2x1x18x18xf32> to vector<2x18x18xf32>
    %206 = vector.broadcast %203 : f32 to vector<2x18x18xf32>
    %207 = arith.mulf %206, %205 : vector<2x18x18xf32>
    %208 = arith.addf %202, %207 : vector<2x18x18xf32>
    %c5_103 = arith.constant 5 : index
    %c1_104 = arith.constant 1 : index
    %209 = memref.load %arg1[%c5_103, %c1_104] : memref<9x5xf32, #tpu.memory_space<smem>>
    %210 = vector.extract_strided_slice %4 {offsets = [0, 1, 0, 0], sizes = [2, 1, 18, 18], strides = [1, 1, 1, 1]} : vector<2x4x18x18xf32> to vector<2x1x18x18xf32>
    %211 = vector.shape_cast %210 : vector<2x1x18x18xf32> to vector<2x18x18xf32>
    %212 = vector.broadcast %209 : f32 to vector<2x18x18xf32>
    %213 = arith.mulf %212, %211 : vector<2x18x18xf32>
    %214 = arith.addf %208, %213 : vector<2x18x18xf32>
    %c5_105 = arith.constant 5 : index
    %c2_106 = arith.constant 2 : index
    %215 = memref.load %arg1[%c5_105, %c2_106] : memref<9x5xf32, #tpu.memory_space<smem>>
    %216 = vector.extract_strided_slice %4 {offsets = [0, 2, 0, 0], sizes = [2, 1, 18, 18], strides = [1, 1, 1, 1]} : vector<2x4x18x18xf32> to vector<2x1x18x18xf32>
    %217 = vector.shape_cast %216 : vector<2x1x18x18xf32> to vector<2x18x18xf32>
    %218 = vector.broadcast %215 : f32 to vector<2x18x18xf32>
    %219 = arith.mulf %218, %217 : vector<2x18x18xf32>
    %220 = arith.addf %214, %219 : vector<2x18x18xf32>
    %c5_107 = arith.constant 5 : index
    %c3_108 = arith.constant 3 : index
    %221 = memref.load %arg1[%c5_107, %c3_108] : memref<9x5xf32, #tpu.memory_space<smem>>
    %222 = vector.extract_strided_slice %4 {offsets = [0, 3, 0, 0], sizes = [2, 1, 18, 18], strides = [1, 1, 1, 1]} : vector<2x4x18x18xf32> to vector<2x1x18x18xf32>
    %223 = vector.shape_cast %222 : vector<2x1x18x18xf32> to vector<2x18x18xf32>
    %224 = vector.broadcast %221 : f32 to vector<2x18x18xf32>
    %225 = arith.mulf %224, %223 : vector<2x18x18xf32>
    %226 = arith.addf %220, %225 : vector<2x18x18xf32>
    %cst_109 = arith.constant 5.000000e-01 : f32
    %227 = vector.broadcast %cst_109 : f32 to vector<2x18x18xf32>
    %228 = arith.mulf %227, %226 : vector<2x18x18xf32>
    %229 = math.tanh %228 : vector<2x18x18xf32>
    %cst_110 = arith.constant 5.000000e-01 : f32
    %230 = vector.broadcast %cst_110 : f32 to vector<2x18x18xf32>
    %231 = arith.mulf %230, %229 : vector<2x18x18xf32>
    %cst_111 = arith.constant 5.000000e-01 : f32
    %232 = vector.broadcast %cst_111 : f32 to vector<2x18x18xf32>
    %233 = arith.addf %231, %232 : vector<2x18x18xf32>
    %234 = vector.extract_strided_slice %5 {offsets = [0, 5, 0, 0], sizes = [2, 1, 18, 18], strides = [1, 1, 1, 1]} : vector<2x9x18x18xf32> to vector<2x1x18x18xf32>
    %235 = vector.shape_cast %234 : vector<2x1x18x18xf32> to vector<2x18x18xf32>
    %236 = arith.addf %233, %235 : vector<2x18x18xf32>
    %c0_112 = arith.constant 0 : index
    %c5_113 = arith.constant 5 : index
    %c0_114 = arith.constant 0 : index
    %c0_115 = arith.constant 0 : index
    %237 = vector.load %arg3[%c0_112, %c5_113, %c0_114, %c0_115] : memref<2x9x18x18xf32, #tpu.memory_space<vmem>>, vector<2x1x18x18xf32>
    %238 = vector.shape_cast %237 : vector<2x1x18x18xf32> to vector<2x18x18xf32>
    %239 = vector.shape_cast %236 : vector<2x18x18xf32> to vector<2x1x18x18xf32>
    tpu.vector_store %arg3[%c0_112, %c5_113, %c0_114, %c0_115], %239 {strides = array<i32>} : memref<2x9x18x18xf32, #tpu.memory_space<vmem>>, vector<2x1x18x18xf32>,
    %c6 = arith.constant 6 : index
    %c4_116 = arith.constant 4 : index
    %240 = memref.load %arg1[%c6, %c4_116] : memref<9x5xf32, #tpu.memory_space<smem>>
    %241 = vector.broadcast %240 : f32 to vector<2x18x18xf32>
    %c6_117 = arith.constant 6 : index
    %c0_118 = arith.constant 0 : index
    %242 = memref.load %arg1[%c6_117, %c0_118] : memref<9x5xf32, #tpu.memory_space<smem>>
    %243 = vector.extract_strided_slice %4 {offsets = [0, 0, 0, 0], sizes = [2, 1, 18, 18], strides = [1, 1, 1, 1]} : vector<2x4x18x18xf32> to vector<2x1x18x18xf32>
    %244 = vector.shape_cast %243 : vector<2x1x18x18xf32> to vector<2x18x18xf32>
    %245 = vector.broadcast %242 : f32 to vector<2x18x18xf32>
    %246 = arith.mulf %245, %244 : vector<2x18x18xf32>
    %247 = arith.addf %241, %246 : vector<2x18x18xf32>
    %c6_119 = arith.constant 6 : index
    %c1_120 = arith.constant 1 : index
    %248 = memref.load %arg1[%c6_119, %c1_120] : memref<9x5xf32, #tpu.memory_space<smem>>
    %249 = vector.extract_strided_slice %4 {offsets = [0, 1, 0, 0], sizes = [2, 1, 18, 18], strides = [1, 1, 1, 1]} : vector<2x4x18x18xf32> to vector<2x1x18x18xf32>
    %250 = vector.shape_cast %249 : vector<2x1x18x18xf32> to vector<2x18x18xf32>
    %251 = vector.broadcast %248 : f32 to vector<2x18x18xf32>
    %252 = arith.mulf %251, %250 : vector<2x18x18xf32>
    %253 = arith.addf %247, %252 : vector<2x18x18xf32>
    %c6_121 = arith.constant 6 : index
    %c2_122 = arith.constant 2 : index
    %254 = memref.load %arg1[%c6_121, %c2_122] : memref<9x5xf32, #tpu.memory_space<smem>>
    %255 = vector.extract_strided_slice %4 {offsets = [0, 2, 0, 0], sizes = [2, 1, 18, 18], strides = [1, 1, 1, 1]} : vector<2x4x18x18xf32> to vector<2x1x18x18xf32>
    %256 = vector.shape_cast %255 : vector<2x1x18x18xf32> to vector<2x18x18xf32>
    %257 = vector.broadcast %254 : f32 to vector<2x18x18xf32>
    %258 = arith.mulf %257, %256 : vector<2x18x18xf32>
    %259 = arith.addf %253, %258 : vector<2x18x18xf32>
    %c6_123 = arith.constant 6 : index
    %c3_124 = arith.constant 3 : index
    %260 = memref.load %arg1[%c6_123, %c3_124] : memref<9x5xf32, #tpu.memory_space<smem>>
    %261 = vector.extract_strided_slice %4 {offsets = [0, 3, 0, 0], sizes = [2, 1, 18, 18], strides = [1, 1, 1, 1]} : vector<2x4x18x18xf32> to vector<2x1x18x18xf32>
    %262 = vector.shape_cast %261 : vector<2x1x18x18xf32> to vector<2x18x18xf32>
    %263 = vector.broadcast %260 : f32 to vector<2x18x18xf32>
    %264 = arith.mulf %263, %262 : vector<2x18x18xf32>
    %265 = arith.addf %259, %264 : vector<2x18x18xf32>
    %cst_125 = arith.constant 5.000000e-01 : f32
    %266 = vector.broadcast %cst_125 : f32 to vector<2x18x18xf32>
    %267 = arith.mulf %266, %265 : vector<2x18x18xf32>
    %268 = math.tanh %267 : vector<2x18x18xf32>
    %cst_126 = arith.constant 5.000000e-01 : f32
    %269 = vector.broadcast %cst_126 : f32 to vector<2x18x18xf32>
    %270 = arith.mulf %269, %268 : vector<2x18x18xf32>
    %cst_127 = arith.constant 5.000000e-01 : f32
    %271 = vector.broadcast %cst_127 : f32 to vector<2x18x18xf32>
    %272 = arith.addf %270, %271 : vector<2x18x18xf32>
    %273 = vector.extract_strided_slice %5 {offsets = [0, 6, 0, 0], sizes = [2, 1, 18, 18], strides = [1, 1, 1, 1]} : vector<2x9x18x18xf32> to vector<2x1x18x18xf32>
    %274 = vector.shape_cast %273 : vector<2x1x18x18xf32> to vector<2x18x18xf32>
    %275 = arith.addf %272, %274 : vector<2x18x18xf32>
    %c0_128 = arith.constant 0 : index
    %c6_129 = arith.constant 6 : index
    %c0_130 = arith.constant 0 : index
    %c0_131 = arith.constant 0 : index
    %276 = vector.load %arg3[%c0_128, %c6_129, %c0_130, %c0_131] : memref<2x9x18x18xf32, #tpu.memory_space<vmem>>, vector<2x1x18x18xf32>
    %277 = vector.shape_cast %276 : vector<2x1x18x18xf32> to vector<2x18x18xf32>
    %278 = vector.shape_cast %275 : vector<2x18x18xf32> to vector<2x1x18x18xf32>
    tpu.vector_store %arg3[%c0_128, %c6_129, %c0_130, %c0_131], %278 {strides = array<i32>} : memref<2x9x18x18xf32, #tpu.memory_space<vmem>>, vector<2x1x18x18xf32>,
    %c7 = arith.constant 7 : index
    %c4_132 = arith.constant 4 : index
    %279 = memref.load %arg1[%c7, %c4_132] : memref<9x5xf32, #tpu.memory_space<smem>>
    %280 = vector.broadcast %279 : f32 to vector<2x18x18xf32>
    %c7_133 = arith.constant 7 : index
    %c0_134 = arith.constant 0 : index
    %281 = memref.load %arg1[%c7_133, %c0_134] : memref<9x5xf32, #tpu.memory_space<smem>>
    %282 = vector.extract_strided_slice %4 {offsets = [0, 0, 0, 0], sizes = [2, 1, 18, 18], strides = [1, 1, 1, 1]} : vector<2x4x18x18xf32> to vector<2x1x18x18xf32>
    %283 = vector.shape_cast %282 : vector<2x1x18x18xf32> to vector<2x18x18xf32>
    %284 = vector.broadcast %281 : f32 to vector<2x18x18xf32>
    %285 = arith.mulf %284, %283 : vector<2x18x18xf32>
    %286 = arith.addf %280, %285 : vector<2x18x18xf32>
    %c7_135 = arith.constant 7 : index
    %c1_136 = arith.constant 1 : index
    %287 = memref.load %arg1[%c7_135, %c1_136] : memref<9x5xf32, #tpu.memory_space<smem>>
    %288 = vector.extract_strided_slice %4 {offsets = [0, 1, 0, 0], sizes = [2, 1, 18, 18], strides = [1, 1, 1, 1]} : vector<2x4x18x18xf32> to vector<2x1x18x18xf32>
    %289 = vector.shape_cast %288 : vector<2x1x18x18xf32> to vector<2x18x18xf32>
    %290 = vector.broadcast %287 : f32 to vector<2x18x18xf32>
    %291 = arith.mulf %290, %289 : vector<2x18x18xf32>
    %292 = arith.addf %286, %291 : vector<2x18x18xf32>
    %c7_137 = arith.constant 7 : index
    %c2_138 = arith.constant 2 : index
    %293 = memref.load %arg1[%c7_137, %c2_138] : memref<9x5xf32, #tpu.memory_space<smem>>
    %294 = vector.extract_strided_slice %4 {offsets = [0, 2, 0, 0], sizes = [2, 1, 18, 18], strides = [1, 1, 1, 1]} : vector<2x4x18x18xf32> to vector<2x1x18x18xf32>
    %295 = vector.shape_cast %294 : vector<2x1x18x18xf32> to vector<2x18x18xf32>
    %296 = vector.broadcast %293 : f32 to vector<2x18x18xf32>
    %297 = arith.mulf %296, %295 : vector<2x18x18xf32>
    %298 = arith.addf %292, %297 : vector<2x18x18xf32>
    %c7_139 = arith.constant 7 : index
    %c3_140 = arith.constant 3 : index
    %299 = memref.load %arg1[%c7_139, %c3_140] : memref<9x5xf32, #tpu.memory_space<smem>>
    %300 = vector.extract_strided_slice %4 {offsets = [0, 3, 0, 0], sizes = [2, 1, 18, 18], strides = [1, 1, 1, 1]} : vector<2x4x18x18xf32> to vector<2x1x18x18xf32>
    %301 = vector.shape_cast %300 : vector<2x1x18x18xf32> to vector<2x18x18xf32>
    %302 = vector.broadcast %299 : f32 to vector<2x18x18xf32>
    %303 = arith.mulf %302, %301 : vector<2x18x18xf32>
    %304 = arith.addf %298, %303 : vector<2x18x18xf32>
    %cst_141 = arith.constant 5.000000e-01 : f32
    %305 = vector.broadcast %cst_141 : f32 to vector<2x18x18xf32>
    %306 = arith.mulf %305, %304 : vector<2x18x18xf32>
    %307 = math.tanh %306 : vector<2x18x18xf32>
    %cst_142 = arith.constant 5.000000e-01 : f32
    %308 = vector.broadcast %cst_142 : f32 to vector<2x18x18xf32>
    %309 = arith.mulf %308, %307 : vector<2x18x18xf32>
    %cst_143 = arith.constant 5.000000e-01 : f32
    %310 = vector.broadcast %cst_143 : f32 to vector<2x18x18xf32>
    %311 = arith.addf %309, %310 : vector<2x18x18xf32>
    %312 = vector.extract_strided_slice %5 {offsets = [0, 7, 0, 0], sizes = [2, 1, 18, 18], strides = [1, 1, 1, 1]} : vector<2x9x18x18xf32> to vector<2x1x18x18xf32>
    %313 = vector.shape_cast %312 : vector<2x1x18x18xf32> to vector<2x18x18xf32>
    %314 = arith.addf %311, %313 : vector<2x18x18xf32>
    %c0_144 = arith.constant 0 : index
    %c7_145 = arith.constant 7 : index
    %c0_146 = arith.constant 0 : index
    %c0_147 = arith.constant 0 : index
    %315 = vector.load %arg3[%c0_144, %c7_145, %c0_146, %c0_147] : memref<2x9x18x18xf32, #tpu.memory_space<vmem>>, vector<2x1x18x18xf32>
    %316 = vector.shape_cast %315 : vector<2x1x18x18xf32> to vector<2x18x18xf32>
    %317 = vector.shape_cast %314 : vector<2x18x18xf32> to vector<2x1x18x18xf32>
    tpu.vector_store %arg3[%c0_144, %c7_145, %c0_146, %c0_147], %317 {strides = array<i32>} : memref<2x9x18x18xf32, #tpu.memory_space<vmem>>, vector<2x1x18x18xf32>,
    %c8 = arith.constant 8 : index
    %c4_148 = arith.constant 4 : index
    %318 = memref.load %arg1[%c8, %c4_148] : memref<9x5xf32, #tpu.memory_space<smem>>
    %319 = vector.broadcast %318 : f32 to vector<2x18x18xf32>
    %c8_149 = arith.constant 8 : index
    %c0_150 = arith.constant 0 : index
    %320 = memref.load %arg1[%c8_149, %c0_150] : memref<9x5xf32, #tpu.memory_space<smem>>
    %321 = vector.extract_strided_slice %4 {offsets = [0, 0, 0, 0], sizes = [2, 1, 18, 18], strides = [1, 1, 1, 1]} : vector<2x4x18x18xf32> to vector<2x1x18x18xf32>
    %322 = vector.shape_cast %321 : vector<2x1x18x18xf32> to vector<2x18x18xf32>
    %323 = vector.broadcast %320 : f32 to vector<2x18x18xf32>
    %324 = arith.mulf %323, %322 : vector<2x18x18xf32>
    %325 = arith.addf %319, %324 : vector<2x18x18xf32>
    %c8_151 = arith.constant 8 : index
    %c1_152 = arith.constant 1 : index
    %326 = memref.load %arg1[%c8_151, %c1_152] : memref<9x5xf32, #tpu.memory_space<smem>>
    %327 = vector.extract_strided_slice %4 {offsets = [0, 1, 0, 0], sizes = [2, 1, 18, 18], strides = [1, 1, 1, 1]} : vector<2x4x18x18xf32> to vector<2x1x18x18xf32>
    %328 = vector.shape_cast %327 : vector<2x1x18x18xf32> to vector<2x18x18xf32>
    %329 = vector.broadcast %326 : f32 to vector<2x18x18xf32>
    %330 = arith.mulf %329, %328 : vector<2x18x18xf32>
    %331 = arith.addf %325, %330 : vector<2x18x18xf32>
    %c8_153 = arith.constant 8 : index
    %c2_154 = arith.constant 2 : index
    %332 = memref.load %arg1[%c8_153, %c2_154] : memref<9x5xf32, #tpu.memory_space<smem>>
    %333 = vector.extract_strided_slice %4 {offsets = [0, 2, 0, 0], sizes = [2, 1, 18, 18], strides = [1, 1, 1, 1]} : vector<2x4x18x18xf32> to vector<2x1x18x18xf32>
    %334 = vector.shape_cast %333 : vector<2x1x18x18xf32> to vector<2x18x18xf32>
    %335 = vector.broadcast %332 : f32 to vector<2x18x18xf32>
    %336 = arith.mulf %335, %334 : vector<2x18x18xf32>
    %337 = arith.addf %331, %336 : vector<2x18x18xf32>
    %c8_155 = arith.constant 8 : index
    %c3_156 = arith.constant 3 : index
    %338 = memref.load %arg1[%c8_155, %c3_156] : memref<9x5xf32, #tpu.memory_space<smem>>
    %339 = vector.extract_strided_slice %4 {offsets = [0, 3, 0, 0], sizes = [2, 1, 18, 18], strides = [1, 1, 1, 1]} : vector<2x4x18x18xf32> to vector<2x1x18x18xf32>
    %340 = vector.shape_cast %339 : vector<2x1x18x18xf32> to vector<2x18x18xf32>
    %341 = vector.broadcast %338 : f32 to vector<2x18x18xf32>
    %342 = arith.mulf %341, %340 : vector<2x18x18xf32>
    %343 = arith.addf %337, %342 : vector<2x18x18xf32>
    %cst_157 = arith.constant 5.000000e-01 : f32
    %344 = vector.broadcast %cst_157 : f32 to vector<2x18x18xf32>
    %345 = arith.mulf %344, %343 : vector<2x18x18xf32>
    %346 = math.tanh %345 : vector<2x18x18xf32>
    %cst_158 = arith.constant 5.000000e-01 : f32
    %347 = vector.broadcast %cst_158 : f32 to vector<2x18x18xf32>
    %348 = arith.mulf %347, %346 : vector<2x18x18xf32>
    %cst_159 = arith.constant 5.000000e-01 : f32
    %349 = vector.broadcast %cst_159 : f32 to vector<2x18x18xf32>
    %350 = arith.addf %348, %349 : vector<2x18x18xf32>
    %351 = vector.extract_strided_slice %5 {offsets = [0, 8, 0, 0], sizes = [2, 1, 18, 18], strides = [1, 1, 1, 1]} : vector<2x9x18x18xf32> to vector<2x1x18x18xf32>
    %352 = vector.shape_cast %351 : vector<2x1x18x18xf32> to vector<2x18x18xf32>
    %353 = arith.addf %350, %352 : vector<2x18x18xf32>
    %c0_160 = arith.constant 0 : index
    %c8_161 = arith.constant 8 : index
    %c0_162 = arith.constant 0 : index
    %c0_163 = arith.constant 0 : index
    %354 = vector.load %arg3[%c0_160, %c8_161, %c0_162, %c0_163] : memref<2x9x18x18xf32, #tpu.memory_space<vmem>>, vector<2x1x18x18xf32>
    %355 = vector.shape_cast %354 : vector<2x1x18x18xf32> to vector<2x18x18xf32>
    %356 = vector.shape_cast %353 : vector<2x18x18xf32> to vector<2x1x18x18xf32>
    tpu.vector_store %arg3[%c0_160, %c8_161, %c0_162, %c0_163], %356 {strides = array<i32>} : memref<2x9x18x18xf32, #tpu.memory_space<vmem>>, vector<2x1x18x18xf32>,
    return
  }
}

</mosaic_0001>

<llo_original>
// kernel: conv1x1_pad1_sigmoid_add.1
$region0: #{conv1x1_pad1_sigmoid_add.1}
  #allocation0 [shape = 'u32[]', space=smem, size = 0x4, offset = 0x4, fixed_abs, tag = 'smem constant byte address 0x4 - core index']
  #allocation1 [shape = 'u32[144,128]{1,0:T(1,128)}', space=vmem, size = 0x12000, scoped, tag = 'internal scratch']
  #allocation2 [shape = 'f32[2,4,18,18]{3,2,1,0:T(8,128)}', space=vmem, size = 0x18000, scoped, tag = 'scratch operand']
  %s0 = inlined_call_operand.vmem [shape: f32[2,4,16,16], index: 0, kind: input, shape index: {}]
  %s1 = inlined_call_operand.vmem [shape: f32[9,5], index: 1, kind: input, shape index: {}]
  %s2 = inlined_call_operand.vmem [shape: f32[2,9,18,18], index: 2, kind: input, shape index: {}, may-alias: {2,3}]
  %s3 = inlined_call_operand.vmem [shape: f32[2,9,18,18], index: 3, kind: output, shape index: {}, may-alias: {2,3}]
  %s4 = sld [smem:[#allocation0]]
  $region26: #{conv1x1_pad1_sigmoid_add.1} parent=0
    _
  %s6 = ssub.s32 1, %s4
  %s7 = scalar_select 0, %s6, %s4
  $region1: #{conv1x1_pad1_sigmoid_add.1} parent=0
    #allocation3 [shape = 'u8[8192]{0}', space=smem, size = 0x2000, scoped, tag = 'input window, operand 1, single buffered']
    #allocation4 [shape = 's32[1]{0}', space=sflag, size = 0x4, scoped, tag = 'scoped memory for conv1x1_pad1_sigmoid_add.1']
    %8 = vsyncpa [#allocation4], 0
    // Predicated region
    $region2: #{conv1x1_pad1_sigmoid_add.1} parent=1 // pred_check
      _
    $region3: #{conv1x1_pad1_sigmoid_add.1} parent=1 // pred_check_branch
      %10 = sbr.rel (0) target = $region5
    $region4: #{conv1x1_pad1_sigmoid_add.1} parent=1 // pred_region
      _
    $region5: #{conv1x1_pad1_sigmoid_add.1} parent=1 // pred_fallthru
      _
    // Predicated region
    $region6: #{conv1x1_pad1_sigmoid_add.1} parent=1 // pred_check
      _
    $region7: #{conv1x1_pad1_sigmoid_add.1} parent=1 // pred_check_branch
      %12 = sbr.rel (0) target = $region9
    $region8: #{conv1x1_pad1_sigmoid_add.1} parent=1 // pred_region
      %s14 = ssub.s32 256, 256
      %15 = vsyncadd [#allocation4], %s14
      %s16 = sshll.u32 %s1, 4
      %s17 = int_to_ptr.vmem [resolvable:$true] %s16
      %22 = dma.vmem_to_smem %s17, 256, [#allocation3], [#allocation4], 128, 128, 8
    $region9: #{conv1x1_pad1_sigmoid_add.1} parent=1 // pred_fallthru
      _
    // Predicated region
    $region10: #{conv1x1_pad1_sigmoid_add.1} parent=1 // pred_check
      _
    $region11: #{conv1x1_pad1_sigmoid_add.1} parent=1 // pred_check_branch
      %24 = sbr.rel (0) target = $region13
    $region12: #{conv1x1_pad1_sigmoid_add.1} parent=1 // pred_region
      _
    $region13: #{conv1x1_pad1_sigmoid_add.1} parent=1 // pred_fallthru
      _
    // Predicated region
    $region14: #{conv1x1_pad1_sigmoid_add.1} parent=1 // pred_check
      _
    $region15: #{conv1x1_pad1_sigmoid_add.1} parent=1 // pred_check_branch
      %26 = sbr.rel (0) target = $region17
    $region16: #{conv1x1_pad1_sigmoid_add.1} parent=1 // pred_region
      %27 = dma.done [#allocation4], 256
    $region17: #{conv1x1_pad1_sigmoid_add.1} parent=1 // pred_fallthru
      _
    %28 = sfence
    %vm29 = vcmask 146432
    %30 = vst.msk [vmem:[#allocation2] sm:$0xff] %vm29, 0.0
    %31 = vst.msk [vmem:[#allocation2 + $0x8] sm:$0xff] %vm29, 0.0
    %vm32 = vcmask 140288
    %33 = vst.msk [vmem:[#allocation2 + $0x10] sm:$0x3] %vm32, 0.0
    %34 = vst.msk [vmem:[#allocation2 + $0x18] sm:$0xff] %vm29, 0.0
    %35 = vst.msk [vmem:[#allocation2 + $0x20] sm:$0xff] %vm29, 0.0
    %36 = vst.msk [vmem:[#allocation2 + $0x28] sm:$0x3] %vm32, 0.0
    %37 = vst.msk [vmem:[#allocation2 + $0x30] sm:$0xff] %vm29, 0.0
    %38 = vst.msk [vmem:[#allocation2 + $0x38] sm:$0xff] %vm29, 0.0
    %39 = vst.msk [vmem:[#allocation2 + $0x40] sm:$0x3] %vm32, 0.0
    %40 = vst.msk [vmem:[#allocation2 + $0x48] sm:$0xff] %vm29, 0.0
    %41 = vst.msk [vmem:[#allocation2 + $0x50] sm:$0xff] %vm29, 0.0
    %42 = vst.msk [vmem:[#allocation2 + $0x58] sm:$0x3] %vm32, 0.0
    %43 = vst.msk [vmem:[#allocation2 + $0x60] sm:$0xff] %vm29, 0.0
    %44 = vst.msk [vmem:[#allocation2 + $0x68] sm:$0xff] %vm29, 0.0
    %45 = vst.msk [vmem:[#allocation2 + $0x70] sm:$0x3] %vm32, 0.0
    %46 = vst.msk [vmem:[#allocation2 + $0x78] sm:$0xff] %vm29, 0.0
    %47 = vst.msk [vmem:[#allocation2 + $0x80] sm:$0xff] %vm29, 0.0
    %48 = vst.msk [vmem:[#allocation2 + $0x88] sm:$0x3] %vm32, 0.0
    %49 = vst.msk [vmem:[#allocation2 + $0x90] sm:$0xff] %vm29, 0.0
    %50 = vst.msk [vmem:[#allocation2 + $0x98] sm:$0xff] %vm29, 0.0
    %51 = vst.msk [vmem:[#allocation2 + $0xa0] sm:$0x3] %vm32, 0.0
    %52 = vst.msk [vmem:[#allocation2 + $0xa8] sm:$0xff] %vm29, 0.0
    %53 = vst.msk [vmem:[#allocation2 + $0xb0] sm:$0xff] %vm29, 0.0
    %54 = vst.msk [vmem:[#allocation2 + $0xb8] sm:$0x3] %vm32, 0.0
    %v55 = vld [vmem:[%s0] sm:$0xff]
    %v56 = vld [vmem:[%s0 + $0x8] sm:$0xff]
    %v57 = vld [vmem:[%s0 + $0x10] sm:$0xff]
    %v58 = vld [vmem:[%s0 + $0x18] sm:$0xff]
    %v59 = vld [vmem:[%s0 + $0x20] sm:$0xff]
    %v60 = vld [vmem:[%s0 + $0x28] sm:$0xff]
    %v61 = vld [vmem:[%s0 + $0x30] sm:$0xff]
    %v62 = vld [vmem:[%s0 + $0x38] sm:$0xff]
    %v63 = vld [vmem:[%s0 + $0x40] sm:$0xff]
    %v64 = vld [vmem:[%s0 + $0x48] sm:$0xff]
    %v65 = vld [vmem:[%s0 + $0x50] sm:$0xff]
    %v66 = vld [vmem:[%s0 + $0x58] sm:$0xff]
    %v67 = vld [vmem:[%s0 + $0x60] sm:$0xff]
    %v68 = vld [vmem:[%s0 + $0x68] sm:$0xff]
    %v69 = vld [vmem:[%s0 + $0x70] sm:$0xff]
    %v70 = vld [vmem:[%s0 + $0x78] sm:$0xff]
    %87 = vrot.lane.b32.xlu0 %v55, 1
    %v88 = vpop.permute.xlu0 %87
    %89 = vrot.lane.b32.xlu0 %v56, 1
    %v90 = vpop.permute.xlu0 %89
    %91 = vrot.lane.b32.xlu0 %v57, 1
    %v92 = vpop.permute.xlu0 %91
    %93 = vrot.lane.b32.xlu0 %v58, 1
    %v94 = vpop.permute.xlu0 %93
    %95 = vrot.lane.b32.xlu0 %v59, 1
    %v96 = vpop.permute.xlu0 %95
    %97 = vrot.lane.b32.xlu0 %v60, 1
    %v98 = vpop.permute.xlu0 %97
    %99 = vrot.lane.b32.xlu0 %v61, 1
    %v100 = vpop.permute.xlu0 %99
    %101 = vrot.lane.b32.xlu0 %v62, 1
    %v102 = vpop.permute.xlu0 %101
    %103 = vrot.lane.b32.xlu0 %v63, 1
    %v104 = vpop.permute.xlu0 %103
    %105 = vrot.lane.b32.xlu0 %v64, 1
    %v106 = vpop.permute.xlu0 %105
    %107 = vrot.lane.b32.xlu0 %v65, 1
    %v108 = vpop.permute.xlu0 %107
    %109 = vrot.lane.b32.xlu0 %v66, 1
    %v110 = vpop.permute.xlu0 %109
    %111 = vrot.lane.b32.xlu0 %v67, 1
    %v112 = vpop.permute.xlu0 %111
    %113 = vrot.lane.b32.xlu0 %v68, 1
    %v114 = vpop.permute.xlu0 %113
    %115 = vrot.lane.b32.xlu0 %v69, 1
    %v116 = vpop.permute.xlu0 %115
    %117 = vrot.lane.b32.xlu0 %v70, 1
    %v118 = vpop.permute.xlu0 %117
    %vm135 = vcmask 138248
    %136 = vst.msk [vmem:[#allocation2 + $0x1] sm:$0xff] %vm135, %v88
    %137 = vst.msk [vmem:[#allocation2 + $0x9] sm:$0xff] %vm135, %v90
    %138 = vst.msk [vmem:[#allocation2 + $0x19] sm:$0xff] %vm135, %v92
    %139 = vst.msk [vmem:[#allocation2 + $0x21] sm:$0xff] %vm135, %v94
    %140 = vst.msk [vmem:[#allocation2 + $0x31] sm:$0xff] %vm135, %v96
    %141 = vst.msk [vmem:[#allocation2 + $0x39] sm:$0xff] %vm135, %v98
    %142 = vst.msk [vmem:[#allocation2 + $0x49] sm:$0xff] %vm135, %v100
    %143 = vst.msk [vmem:[#allocation2 + $0x51] sm:$0xff] %vm135, %v102
    %144 = vst.msk [vmem:[#allocation2 + $0x61] sm:$0xff] %vm135, %v104
    %145 = vst.msk [vmem:[#allocation2 + $0x69] sm:$0xff] %vm135, %v106
    %146 = vst.msk [vmem:[#allocation2 + $0x79] sm:$0xff] %vm135, %v108
    %147 = vst.msk [vmem:[#allocation2 + $0x81] sm:$0xff] %vm135, %v110
    %148 = vst.msk [vmem:[#allocation2 + $0x91] sm:$0xff] %vm135, %v112
    %149 = vst.msk [vmem:[#allocation2 + $0x99] sm:$0xff] %vm135, %v114
    %150 = vst.msk [vmem:[#allocation2 + $0xa9] sm:$0xff] %vm135, %v116
    %151 = vst.msk [vmem:[#allocation2 + $0xb1] sm:$0xff] %vm135, %v118
    %v152 = vld [vmem:[#allocation2] sm:$0xff]
    %v153 = vld [vmem:[#allocation2 + $0x8] sm:$0xff]
    %v154 = vld [vmem:[#allocation2 + $0x10] sm:$0x3]
    %v155 = vld [vmem:[#allocation2 + $0x18] sm:$0xff]
    %v156 = vld [vmem:[#allocation2 + $0x20] sm:$0xff]
    %v157 = vld [vmem:[#allocation2 + $0x28] sm:$0x3]
    %v158 = vld [vmem:[#allocation2 + $0x30] sm:$0xff]
    %v159 = vld [vmem:[#allocation2 + $0x38] sm:$0xff]
    %v160 = vld [vmem:[#allocation2 + $0x40] sm:$0x3]
    %v161 = vld [vmem:[#allocation2 + $0x48] sm:$0xff]
    %v162 = vld [vmem:[#allocation2 + $0x50] sm:$0xff]
    %v163 = vld [vmem:[#allocation2 + $0x58] sm:$0x3]
    %v164 = vld [vmem:[#allocation2 + $0x60] sm:$0xff]
    %v165 = vld [vmem:[#allocation2 + $0x68] sm:$0xff]
    %v166 = vld [vmem:[#allocation2 + $0x70] sm:$0x3]
    %v167 = vld [vmem:[#allocation2 + $0x78] sm:$0xff]
    %v168 = vld [vmem:[#allocation2 + $0x80] sm:$0xff]
    %v169 = vld [vmem:[#allocation2 + $0x88] sm:$0x3]
    %v170 = vld [vmem:[#allocation2 + $0x90] sm:$0xff]
    %v171 = vld [vmem:[#allocation2 + $0x98] sm:$0xff]
    %v172 = vld [vmem:[#allocation2 + $0xa0] sm:$0x3]
    %v173 = vld [vmem:[#allocation2 + $0xa8] sm:$0xff]
    %v174 = vld [vmem:[#allocation2 + $0xb0] sm:$0xff]
    %v175 = vld [vmem:[#allocation2 + $0xb8] sm:$0x3]
    %v176 = vld [vmem:[%s2] sm:$0xff]
    %v177 = vld [vmem:[%s2 + $0x8] sm:$0xff]
    %v178 = vld [vmem:[%s2 + $0x10] sm:$0x3]
    %v179 = vld [vmem:[%s2 + $0x18] sm:$0xff]
    %v180 = vld [vmem:[%s2 + $0x20] sm:$0xff]
    %v181 = vld [vmem:[%s2 + $0x28] sm:$0x3]
    %v182 = vld [vmem:[%s2 + $0x30] sm:$0xff]
    %v183 = vld [vmem:[%s2 + $0x38] sm:$0xff]
    %v184 = vld [vmem:[%s2 + $0x40] sm:$0x3]
    %v185 = vld [vmem:[%s2 + $0x48] sm:$0xff]
    %v186 = vld [vmem:[%s2 + $0x50] sm:$0xff]
    %v187 = vld [vmem:[%s2 + $0x58] sm:$0x3]
    %v188 = vld [vmem:[%s2 + $0x60] sm:$0xff]
    %v189 = vld [vmem:[%s2 + $0x68] sm:$0xff]
    %v190 = vld [vmem:[%s2 + $0x70] sm:$0x3]
    %v191 = vld [vmem:[%s2 + $0x78] sm:$0xff]
    %v192 = vld [vmem:[%s2 + $0x80] sm:$0xff]
    %v193 = vld [vmem:[%s2 + $0x88] sm:$0x3]
    %v194 = vld [vmem:[%s2 + $0x90] sm:$0xff]
    %v195 = vld [vmem:[%s2 + $0x98] sm:$0xff]
    %v196 = vld [vmem:[%s2 + $0xa0] sm:$0x3]
    %v197 = vld [vmem:[%s2 + $0xa8] sm:$0xff]
    %v198 = vld [vmem:[%s2 + $0xb0] sm:$0xff]
    %v199 = vld [vmem:[%s2 + $0xb8] sm:$0x3]
    %v200 = vld [vmem:[%s2 + $0xc0] sm:$0xff]
    %v201 = vld [vmem:[%s2 + $0xc8] sm:$0xff]
    %v202 = vld [vmem:[%s2 + $0xd0] sm:$0x3]
    %v203 = vld [vmem:[%s2 + $0xd8] sm:$0xff]
    %v204 = vld [vmem:[%s2 + $0xe0] sm:$0xff]
    %v205 = vld [vmem:[%s2 + $0xe8] sm:$0x3]
    %v206 = vld [vmem:[%s2 + $0xf0] sm:$0xff]
    %v207 = vld [vmem:[%s2 + $0xf8] sm:$0xff]
    %v208 = vld [vmem:[%s2 + $0x100] sm:$0x3]
    %v209 = vld [vmem:[%s2 + $0x108] sm:$0xff]
    %v210 = vld [vmem:[%s2 + $0x110] sm:$0xff]
    %v211 = vld [vmem:[%s2 + $0x118] sm:$0x3]
    %v212 = vld [vmem:[%s2 + $0x120] sm:$0xff]
    %v213 = vld [vmem:[%s2 + $0x128] sm:$0xff]
    %v214 = vld [vmem:[%s2 + $0x130] sm:$0x3]
    %v215 = vld [vmem:[%s2 + $0x138] sm:$0xff]
    %v216 = vld [vmem:[%s2 + $0x140] sm:$0xff]
    %v217 = vld [vmem:[%s2 + $0x148] sm:$0x3]
    %v218 = vld [vmem:[%s2 + $0x150] sm:$0xff]
    %v219 = vld [vmem:[%s2 + $0x158] sm:$0xff]
    %v220 = vld [vmem:[%s2 + $0x160] sm:$0x3]
    %v221 = vld [vmem:[%s2 + $0x168] sm:$0xff]
    %v222 = vld [vmem:[%s2 + $0x170] sm:$0xff]
    %v223 = vld [vmem:[%s2 + $0x178] sm:$0x3]
    %v224 = vld [vmem:[%s2 + $0x180] sm:$0xff]
    %v225 = vld [vmem:[%s2 + $0x188] sm:$0xff]
    %v226 = vld [vmem:[%s2 + $0x190] sm:$0x3]
    %v227 = vld [vmem:[%s2 + $0x198] sm:$0xff]
    %v228 = vld [vmem:[%s2 + $0x1a0] sm:$0xff]
    %v229 = vld [vmem:[%s2 + $0x1a8] sm:$0x3]
    %s230 = sld [smem:[#allocation3 + $0x4]]
    %v231 = vstv %s230
    %s232 = sld [smem:[#allocation3]]
    %v233 = vstv %s232
    %v234 = vmul.f32 %v233, %v152
    %v235 = vmul.f32 %v233, %v153
    %v236 = vmul.f32 %v233, %v154
    %v237 = vmul.f32 %v233, %v164
    %v238 = vmul.f32 %v233, %v165
    %v239 = vmul.f32 %v233, %v166
    %v240 = vadd.f32 %v231, %v234
    %v241 = vadd.f32 %v231, %v235
    %v242 = vadd.f32 %v231, %v236
    %v243 = vadd.f32 %v231, %v237
    %v244 = vadd.f32 %v231, %v238
    %v245 = vadd.f32 %v231, %v239
    %s246 = sld [smem:[#allocation3 + $0x1]]
    %v247 = vstv %s246
    %v248 = vmul.f32 %v247, %v155
    %v249 = vmul.f32 %v247, %v156
    %v250 = vmul.f32 %v247, %v157
    %v251 = vmul.f32 %v247, %v167
    %v252 = vmul.f32 %v247, %v168
    %v253 = vmul.f32 %v247, %v169
    %v254 = vadd.f32 %v240, %v248
    %v255 = vadd.f32 %v241, %v249
    %v256 = vadd.f32 %v242, %v250
    %v257 = vadd.f32 %v243, %v251
    %v258 = vadd.f32 %v244, %v252
    %v259 = vadd.f32 %v245, %v253
    %s260 = sld [smem:[#allocation3 + $0x2]]
    %v261 = vstv %s260
    %v262 = vmul.f32 %v261, %v158
    %v263 = vmul.f32 %v261, %v159
    %v264 = vmul.f32 %v261, %v160
    %v265 = vmul.f32 %v261, %v170
    %v266 = vmul.f32 %v261, %v171
    %v267 = vmul.f32 %v261, %v172
    %v268 = vadd.f32 %v254, %v262
    %v269 = vadd.f32 %v255, %v263
    %v270 = vadd.f32 %v256, %v264
    %v271 = vadd.f32 %v257, %v265
    %v272 = vadd.f32 %v258, %v266
    %v273 = vadd.f32 %v259, %v267
    %s274 = sld [smem:[#allocation3 + $0x3]]
    %v275 = vstv %s274
    %v276 = vmul.f32 %v275, %v161
    %v277 = vmul.f32 %v275, %v162
    %v278 = vmul.f32 %v275, %v163
    %v279 = vmul.f32 %v275, %v173
    %v280 = vmul.f32 %v275, %v174
    %v281 = vmul.f32 %v275, %v175
    %v282 = vadd.f32 %v268, %v276
    %v283 = vadd.f32 %v269, %v277
    %v284 = vadd.f32 %v270, %v278
    %v285 = vadd.f32 %v271, %v279
    %v286 = vadd.f32 %v272, %v280
    %v287 = vadd.f32 %v273, %v281
    %v288 = vmul.f32 %v282, 0.5
    %v289 = vmul.f32 %v283, 0.5
    %v290 = vmul.f32 %v284, 0.5
    %v291 = vmul.f32 %v285, 0.5
    %v292 = vmul.f32 %v286, 0.5
    %v293 = vmul.f32 %v287, 0.5
    %v294 = vtanh.pop %v288
    %v295 = vtanh.pop %v289
    %v296 = vtanh.pop %v290
    %v297 = vtanh.pop %v291
    %v298 = vtanh.pop %v292
    %v299 = vtanh.pop %v293
    %v300 = vmul.f32 %v294, 0.5
    %v301 = vmul.f32 %v295, 0.5
    %v302 = vmul.f32 %v296, 0.5
    %v303 = vmul.f32 %v297, 0.5
    %v304 = vmul.f32 %v298, 0.5
    %v305 = vmul.f32 %v299, 0.5
    %v306 = vadd.f32 %v300, 0.5
    %v307 = vadd.f32 %v301, 0.5
    %v308 = vadd.f32 %v302, 0.5
    %v309 = vadd.f32 %v303, 0.5
    %v310 = vadd.f32 %v304, 0.5
    %v311 = vadd.f32 %v305, 0.5
    %v312 = vadd.f32 %v306, %v176
    %v313 = vadd.f32 %v307, %v177
    %v314 = vadd.f32 %v308, %v178
    %v315 = vadd.f32 %v309, %v203
    %v316 = vadd.f32 %v310, %v204
    %v317 = vadd.f32 %v311, %v205
    %318 = vst.msk [vmem:[%s3] sm:$0xff] %vm29, %v312
    %319 = vst.msk [vmem:[%s3 + $0x8] sm:$0xff] %vm29, %v313
    %320 = vst.msk [vmem:[%s3 + $0x10] sm:$0x3] %vm32, %v314
    %321 = vst.msk [vmem:[%s3 + $0xd8] sm:$0xff] %vm29, %v315
    %322 = vst.msk [vmem:[%s3 + $0xe0] sm:$0xff] %vm29, %v316
    %323 = vst.msk [vmem:[%s3 + $0xe8] sm:$0x3] %vm32, %v317
    %s324 = sld [smem:[#allocation3 + $0x84]]
    %v325 = vstv %s324
    %s326 = sld [smem:[#allocation3 + $0x80]]
    %v327 = vstv %s326
    %v328 = vmul.f32 %v327, %v152
    %v329 = vmul.f32 %v327, %v153
    %v330 = vmul.f32 %v327, %v154
    %v331 = vmul.f32 %v327, %v164
    %v332 = vmul.f32 %v327, %v165
    %v333 = vmul.f32 %v327, %v166
    %v334 = vadd.f32 %v325, %v328
    %v335 = vadd.f32 %v325, %v329
    %v336 = vadd.f32 %v325, %v330
    %v337 = vadd.f32 %v325, %v331
    %v338 = vadd.f32 %v325, %v332
    %v339 = vadd.f32 %v325, %v333
    %s340 = sld [smem:[#allocation3 + $0x81]]
    %v341 = vstv %s340
    %v342 = vmul.f32 %v341, %v155
    %v343 = vmul.f32 %v341, %v156
    %v344 = vmul.f32 %v341, %v157
    %v345 = vmul.f32 %v341, %v167
    %v346 = vmul.f32 %v341, %v168
    %v347 = vmul.f32 %v341, %v169
    %v348 = vadd.f32 %v334, %v342
    %v349 = vadd.f32 %v335, %v343
    %v350 = vadd.f32 %v336, %v344
    %v351 = vadd.f32 %v337, %v345
    %v352 = vadd.f32 %v338, %v346
    %v353 = vadd.f32 %v339, %v347
    %s354 = sld [smem:[#allocation3 + $0x82]]
    %v355 = vstv %s354
    %v356 = vmul.f32 %v355, %v158
    %v357 = vmul.f32 %v355, %v159
    %v358 = vmul.f32 %v355, %v160
    %v359 = vmul.f32 %v355, %v170
    %v360 = vmul.f32 %v355, %v171
    %v361 = vmul.f32 %v355, %v172
    %v362 = vadd.f32 %v348, %v356
    %v363 = vadd.f32 %v349, %v357
    %v364 = vadd.f32 %v350, %v358
    %v365 = vadd.f32 %v351, %v359
    %v366 = vadd.f32 %v352, %v360
    %v367 = vadd.f32 %v353, %v361
    %s368 = sld [smem:[#allocation3 + $0x83]]
    %v369 = vstv %s368
    %v370 = vmul.f32 %v369, %v161
    %v371 = vmul.f32 %v369, %v162
    %v372 = vmul.f32 %v369, %v163
    %v373 = vmul.f32 %v369, %v173
    %v374 = vmul.f32 %v369, %v174
    %v375 = vmul.f32 %v369, %v175
    %v376 = vadd.f32 %v362, %v370
    %v377 = vadd.f32 %v363, %v371
    %v378 = vadd.f32 %v364, %v372
    %v379 = vadd.f32 %v365, %v373
    %v380 = vadd.f32 %v366, %v374
    %v381 = vadd.f32 %v367, %v375
    %v382 = vmul.f32 %v376, 0.5
    %v383 = vmul.f32 %v377, 0.5
    %v384 = vmul.f32 %v378, 0.5
    %v385 = vmul.f32 %v379, 0.5
    %v386 = vmul.f32 %v380, 0.5
    %v387 = vmul.f32 %v381, 0.5
    %v388 = vtanh.pop %v382
    %v389 = vtanh.pop %v383
    %v390 = vtanh.pop %v384
    %v391 = vtanh.pop %v385
    %v392 = vtanh.pop %v386
    %v393 = vtanh.pop %v387
    %v394 = vmul.f32 %v388, 0.5
    %v395 = vmul.f32 %v389, 0.5
    %v396 = vmul.f32 %v390, 0.5
    %v397 = vmul.f32 %v391, 0.5
    %v398 = vmul.f32 %v392, 0.5
    %v399 = vmul.f32 %v393, 0.5
    %v400 = vadd.f32 %v394, 0.5
    %v401 = vadd.f32 %v395, 0.5
    %v402 = vadd.f32 %v396, 0.5
    %v403 = vadd.f32 %v397, 0.5
    %v404 = vadd.f32 %v398, 0.5
    %v405 = vadd.f32 %v399, 0.5
    %v406 = vadd.f32 %v400, %v179
    %v407 = vadd.f32 %v401, %v180
    %v408 = vadd.f32 %v402, %v181
    %v409 = vadd.f32 %v403, %v206
    %v410 = vadd.f32 %v404, %v207
    %v411 = vadd.f32 %v405, %v208
    %s412 = scalar_lea.vmem %s3, 24
    %413 = vst.msk [vmem:[%s412] sm:$0xff] %vm29, %v406
    %414 = vst.msk [vmem:[%s412 + $0x8] sm:$0xff] %vm29, %v407
    %415 = vst.msk [vmem:[%s412 + $0x10] sm:$0x3] %vm32, %v408
    %416 = vst.msk [vmem:[%s412 + $0xd8] sm:$0xff] %vm29, %v409
    %417 = vst.msk [vmem:[%s412 + $0xe0] sm:$0xff] %vm29, %v410
    %418 = vst.msk [vmem:[%s412 + $0xe8] sm:$0x3] %vm32, %v411
    %s419 = sld [smem:[#allocation3 + $0x104]]
    %v420 = vstv %s419
    %s421 = sld [smem:[#allocation3 + $0x100]]
    %v422 = vstv %s421
    %v423 = vmul.f32 %v422, %v152
    %v424 = vmul.f32 %v422, %v153
    %v425 = vmul.f32 %v422, %v154
    %v426 = vmul.f32 %v422, %v164
    %v427 = vmul.f32 %v422, %v165
    %v428 = vmul.f32 %v422, %v166
    %v429 = vadd.f32 %v420, %v423
    %v430 = vadd.f32 %v420, %v424
    %v431 = vadd.f32 %v420, %v425
    %v432 = vadd.f32 %v420, %v426
    %v433 = vadd.f32 %v420, %v427
    %v434 = vadd.f32 %v420, %v428
    %s435 = sld [smem:[#allocation3 + $0x101]]
    %v436 = vstv %s435
    %v437 = vmul.f32 %v436, %v155
    %v438 = vmul.f32 %v436, %v156
    %v439 = vmul.f32 %v436, %v157
    %v440 = vmul.f32 %v436, %v167
    %v441 = vmul.f32 %v436, %v168
    %v442 = vmul.f32 %v436, %v169
    %v443 = vadd.f32 %v429, %v437
    %v444 = vadd.f32 %v430, %v438
    %v445 = vadd.f32 %v431, %v439
    %v446 = vadd.f32 %v432, %v440
    %v447 = vadd.f32 %v433, %v441
    %v448 = vadd.f32 %v434, %v442
    %s449 = sld [smem:[#allocation3 + $0x102]]
    %v450 = vstv %s449
    %v451 = vmul.f32 %v450, %v158
    %v452 = vmul.f32 %v450, %v159
    %v453 = vmul.f32 %v450, %v160
    %v454 = vmul.f32 %v450, %v170
    %v455 = vmul.f32 %v450, %v171
    %v456 = vmul.f32 %v450, %v172
    %v457 = vadd.f32 %v443, %v451
    %v458 = vadd.f32 %v444, %v452
    %v459 = vadd.f32 %v445, %v453
    %v460 = vadd.f32 %v446, %v454
    %v461 = vadd.f32 %v447, %v455
    %v462 = vadd.f32 %v448, %v456
    %s463 = sld [smem:[#allocation3 + $0x103]]
    %v464 = vstv %s463
    %v465 = vmul.f32 %v464, %v161
    %v466 = vmul.f32 %v464, %v162
    %v467 = vmul.f32 %v464, %v163
    %v468 = vmul.f32 %v464, %v173
    %v469 = vmul.f32 %v464, %v174
    %v470 = vmul.f32 %v464, %v175
    %v471 = vadd.f32 %v457, %v465
    %v472 = vadd.f32 %v458, %v466
    %v473 = vadd.f32 %v459, %v467
    %v474 = vadd.f32 %v460, %v468
    %v475 = vadd.f32 %v461, %v469
    %v476 = vadd.f32 %v462, %v470
    %v477 = vmul.f32 %v471, 0.5
    %v478 = vmul.f32 %v472, 0.5
    %v479 = vmul.f32 %v473, 0.5
    %v480 = vmul.f32 %v474, 0.5
    %v481 = vmul.f32 %v475, 0.5
    %v482 = vmul.f32 %v476, 0.5
    %v483 = vtanh.pop %v477
    %v484 = vtanh.pop %v478
    %v485 = vtanh.pop %v479
    %v486 = vtanh.pop %v480
    %v487 = vtanh.pop %v481
    %v488 = vtanh.pop %v482
    %v489 = vmul.f32 %v483, 0.5
    %v490 = vmul.f32 %v484, 0.5
    %v491 = vmul.f32 %v485, 0.5
    %v492 = vmul.f32 %v486, 0.5
    %v493 = vmul.f32 %v487, 0.5
    %v494 = vmul.f32 %v488, 0.5
    %v495 = vadd.f32 %v489, 0.5
    %v496 = vadd.f32 %v490, 0.5
    %v497 = vadd.f32 %v491, 0.5
    %v498 = vadd.f32 %v492, 0.5
    %v499 = vadd.f32 %v493, 0.5
    %v500 = vadd.f32 %v494, 0.5
    %v501 = vadd.f32 %v495, %v182
    %v502 = vadd.f32 %v496, %v183
    %v503 = vadd.f32 %v497, %v184
    %v504 = vadd.f32 %v498, %v209
    %v505 = vadd.f32 %v499, %v210
    %v506 = vadd.f32 %v500, %v211
    %s507 = scalar_lea.vmem %s3, 48
    %508 = vst.msk [vmem:[%s507] sm:$0xff] %vm29, %v501
    %509 = vst.msk [vmem:[%s507 + $0x8] sm:$0xff] %vm29, %v502
    %510 = vst.msk [vmem:[%s507 + $0x10] sm:$0x3] %vm32, %v503
    %511 = vst.msk [vmem:[%s507 + $0xd8] sm:$0xff] %vm29, %v504
    %512 = vst.msk [vmem:[%s507 + $0xe0] sm:$0xff] %vm29, %v505
    %513 = vst.msk [vmem:[%s507 + $0xe8] sm:$0x3] %vm32, %v506
    %s514 = sld [smem:[#allocation3 + $0x184]]
    %v515 = vstv %s514
    %s516 = sld [smem:[#allocation3 + $0x180]]
    %v517 = vstv %s516
    %v518 = vmul.f32 %v517, %v152
    %v519 = vmul.f32 %v517, %v153
    %v520 = vmul.f32 %v517, %v154
    %v521 = vmul.f32 %v517, %v164
    %v522 = vmul.f32 %v517, %v165
    %v523 = vmul.f32 %v517, %v166
    %v524 = vadd.f32 %v515, %v518
    %v525 = vadd.f32 %v515, %v519
    %v526 = vadd.f32 %v515, %v520
    %v527 = vadd.f32 %v515, %v521
    %v528 = vadd.f32 %v515, %v522
    %v529 = vadd.f32 %v515, %v523
    %s530 = sld [smem:[#allocation3 + $0x181]]
    %v531 = vstv %s530
    %v532 = vmul.f32 %v531, %v155
    %v533 = vmul.f32 %v531, %v156
    %v534 = vmul.f32 %v531, %v157
    %v535 = vmul.f32 %v531, %v167
    %v536 = vmul.f32 %v531, %v168
    %v537 = vmul.f32 %v531, %v169
    %v538 = vadd.f32 %v524, %v532
    %v539 = vadd.f32 %v525, %v533
    %v540 = vadd.f32 %v526, %v534
    %v541 = vadd.f32 %v527, %v535
    %v542 = vadd.f32 %v528, %v536
    %v543 = vadd.f32 %v529, %v537
    %s544 = sld [smem:[#allocation3 + $0x182]]
    %v545 = vstv %s544
    %v546 = vmul.f32 %v545, %v158
    %v547 = vmul.f32 %v545, %v159
    %v548 = vmul.f32 %v545, %v160
    %v549 = vmul.f32 %v545, %v170
    %v550 = vmul.f32 %v545, %v171
    %v551 = vmul.f32 %v545, %v172
    %v552 = vadd.f32 %v538, %v546
    %v553 = vadd.f32 %v539, %v547
    %v554 = vadd.f32 %v540, %v548
    %v555 = vadd.f32 %v541, %v549
    %v556 = vadd.f32 %v542, %v550
    %v557 = vadd.f32 %v543, %v551
    %s558 = sld [smem:[#allocation3 + $0x183]]
    %v559 = vstv %s558
    %v560 = vmul.f32 %v559, %v161
    %v561 = vmul.f32 %v559, %v162
    %v562 = vmul.f32 %v559, %v163
    %v563 = vmul.f32 %v559, %v173
    %v564 = vmul.f32 %v559, %v174
    %v565 = vmul.f32 %v559, %v175
    %v566 = vadd.f32 %v552, %v560
    %v567 = vadd.f32 %v553, %v561
    %v568 = vadd.f32 %v554, %v562
    %v569 = vadd.f32 %v555, %v563
    %v570 = vadd.f32 %v556, %v564
    %v571 = vadd.f32 %v557, %v565
    %v572 = vmul.f32 %v566, 0.5
    %v573 = vmul.f32 %v567, 0.5
    %v574 = vmul.f32 %v568, 0.5
    %v575 = vmul.f32 %v569, 0.5
    %v576 = vmul.f32 %v570, 0.5
    %v577 = vmul.f32 %v571, 0.5
    %v578 = vtanh.pop %v572
    %v579 = vtanh.pop %v573
    %v580 = vtanh.pop %v574
    %v581 = vtanh.pop %v575
    %v582 = vtanh.pop %v576
    %v583 = vtanh.pop %v577
    %v584 = vmul.f32 %v578, 0.5
    %v585 = vmul.f32 %v579, 0.5
    %v586 = vmul.f32 %v580, 0.5
    %v587 = vmul.f32 %v581, 0.5
    %v588 = vmul.f32 %v582, 0.5
    %v589 = vmul.f32 %v583, 0.5
    %v590 = vadd.f32 %v584, 0.5
    %v591 = vadd.f32 %v585, 0.5
    %v592 = vadd.f32 %v586, 0.5
    %v593 = vadd.f32 %v587, 0.5
    %v594 = vadd.f32 %v588, 0.5
    %v595 = vadd.f32 %v589, 0.5
    %v596 = vadd.f32 %v590, %v185
    %v597 = vadd.f32 %v591, %v186
    %v598 = vadd.f32 %v592, %v187
    %v599 = vadd.f32 %v593, %v212
    %v600 = vadd.f32 %v594, %v213
    %v601 = vadd.f32 %v595, %v214
    %s602 = scalar_lea.vmem %s3, 72
    %603 = vst.msk [vmem:[%s602] sm:$0xff] %vm29, %v596
    %604 = vst.msk [vmem:[%s602 + $0x8] sm:$0xff] %vm29, %v597
    %605 = vst.msk [vmem:[%s602 + $0x10] sm:$0x3] %vm32, %v598
    %606 = vst.msk [vmem:[%s602 + $0xd8] sm:$0xff] %vm29, %v599
    %607 = vst.msk [vmem:[%s602 + $0xe0] sm:$0xff] %vm29, %v600
    %608 = vst.msk [vmem:[%s602 + $0xe8] sm:$0x3] %vm32, %v601
    %s609 = sld [smem:[#allocation3 + $0x204]]
    %v610 = vstv %s609
    %s611 = sld [smem:[#allocation3 + $0x200]]
    %v612 = vstv %s611
    %v613 = vmul.f32 %v612, %v152
    %v614 = vmul.f32 %v612, %v153
    %v615 = vmul.f32 %v612, %v154
    %v616 = vmul.f32 %v612, %v164
    %v617 = vmul.f32 %v612, %v165
    %v618 = vmul.f32 %v612, %v166
    %v619 = vadd.f32 %v610, %v613
    %v620 = vadd.f32 %v610, %v614
    %v621 = vadd.f32 %v610, %v615
    %v622 = vadd.f32 %v610, %v616
    %v623 = vadd.f32 %v610, %v617
    %v624 = vadd.f32 %v610, %v618
    %s625 = sld [smem:[#allocation3 + $0x201]]
    %v626 = vstv %s625
    %v627 = vmul.f32 %v626, %v155
    %v628 = vmul.f32 %v626, %v156
    %v629 = vmul.f32 %v626, %v157
    %v630 = vmul.f32 %v626, %v167
    %v631 = vmul.f32 %v626, %v168
    %v632 = vmul.f32 %v626, %v169
    %v633 = vadd.f32 %v619, %v627
    %v634 = vadd.f32 %v620, %v628
    %v635 = vadd.f32 %v621, %v629
    %v636 = vadd.f32 %v622, %v630
    %v637 = vadd.f32 %v623, %v631
    %v638 = vadd.f32 %v624, %v632
    %s639 = sld [smem:[#allocation3 + $0x202]]
    %v640 = vstv %s639
    %v641 = vmul.f32 %v640, %v158
    %v642 = vmul.f32 %v640, %v159
    %v643 = vmul.f32 %v640, %v160
    %v644 = vmul.f32 %v640, %v170
    %v645 = vmul.f32 %v640, %v171
    %v646 = vmul.f32 %v640, %v172
    %v647 = vadd.f32 %v633, %v641
    %v648 = vadd.f32 %v634, %v642
    %v649 = vadd.f32 %v635, %v643
    %v650 = vadd.f32 %v636, %v644
    %v651 = vadd.f32 %v637, %v645
    %v652 = vadd.f32 %v638, %v646
    %s653 = sld [smem:[#allocation3 + $0x203]]
    %v654 = vstv %s653
    %v655 = vmul.f32 %v654, %v161
    %v656 = vmul.f32 %v654, %v162
    %v657 = vmul.f32 %v654, %v163
    %v658 = vmul.f32 %v654, %v173
    %v659 = vmul.f32 %v654, %v174
    %v660 = vmul.f32 %v654, %v175
    %v661 = vadd.f32 %v647, %v655
    %v662 = vadd.f32 %v648, %v656
    %v663 = vadd.f32 %v649, %v657
    %v664 = vadd.f32 %v650, %v658
    %v665 = vadd.f32 %v651, %v659
    %v666 = vadd.f32 %v652, %v660
    %v667 = vmul.f32 %v661, 0.5
    %v668 = vmul.f32 %v662, 0.5
    %v669 = vmul.f32 %v663, 0.5
    %v670 = vmul.f32 %v664, 0.5
    %v671 = vmul.f32 %v665, 0.5
    %v672 = vmul.f32 %v666, 0.5
    %v673 = vtanh.pop %v667
    %v674 = vtanh.pop %v668
    %v675 = vtanh.pop %v669
    %v676 = vtanh.pop %v670
    %v677 = vtanh.pop %v671
    %v678 = vtanh.pop %v672
    %v679 = vmul.f32 %v673, 0.5
    %v680 = vmul.f32 %v674, 0.5
    %v681 = vmul.f32 %v675, 0.5
    %v682 = vmul.f32 %v676, 0.5
    %v683 = vmul.f32 %v677, 0.5
    %v684 = vmul.f32 %v678, 0.5
    %v685 = vadd.f32 %v679, 0.5
    %v686 = vadd.f32 %v680, 0.5
    %v687 = vadd.f32 %v681, 0.5
    %v688 = vadd.f32 %v682, 0.5
    %v689 = vadd.f32 %v683, 0.5
    %v690 = vadd.f32 %v684, 0.5
    %v691 = vadd.f32 %v685, %v188
    %v692 = vadd.f32 %v686, %v189
    %v693 = vadd.f32 %v687, %v190
    %v694 = vadd.f32 %v688, %v215
    %v695 = vadd.f32 %v689, %v216
    %v696 = vadd.f32 %v690, %v217
    %s697 = scalar_lea.vmem %s3, 96
    %698 = vst.msk [vmem:[%s697] sm:$0xff] %vm29, %v691
    %699 = vst.msk [vmem:[%s697 + $0x8] sm:$0xff] %vm29, %v692
    %700 = vst.msk [vmem:[%s697 + $0x10] sm:$0x3] %vm32, %v693
    %701 = vst.msk [vmem:[%s697 + $0xd8] sm:$0xff] %vm29, %v694
    %702 = vst.msk [vmem:[%s697 + $0xe0] sm:$0xff] %vm29, %v695
    %703 = vst.msk [vmem:[%s697 + $0xe8] sm:$0x3] %vm32, %v696
    %s704 = sld [smem:[#allocation3 + $0x284]]
    %v705 = vstv %s704
    %s706 = sld [smem:[#allocation3 + $0x280]]
    %v707 = vstv %s706
    %v708 = vmul.f32 %v707, %v152
    %v709 = vmul.f32 %v707, %v153
    %v710 = vmul.f32 %v707, %v154
    %v711 = vmul.f32 %v707, %v164
    %v712 = vmul.f32 %v707, %v165
    %v713 = vmul.f32 %v707, %v166
    %v714 = vadd.f32 %v705, %v708
    %v715 = vadd.f32 %v705, %v709
    %v716 = vadd.f32 %v705, %v710
    %v717 = vadd.f32 %v705, %v711
    %v718 = vadd.f32 %v705, %v712
    %v719 = vadd.f32 %v705, %v713
    %s720 = sld [smem:[#allocation3 + $0x281]]
    %v721 = vstv %s720
    %v722 = vmul.f32 %v721, %v155
    %v723 = vmul.f32 %v721, %v156
    %v724 = vmul.f32 %v721, %v157
    %v725 = vmul.f32 %v721, %v167
    %v726 = vmul.f32 %v721, %v168
    %v727 = vmul.f32 %v721, %v169
    %v728 = vadd.f32 %v714, %v722
    %v729 = vadd.f32 %v715, %v723
    %v730 = vadd.f32 %v716, %v724
    %v731 = vadd.f32 %v717, %v725
    %v732 = vadd.f32 %v718, %v726
    %v733 = vadd.f32 %v719, %v727
    %s734 = sld [smem:[#allocation3 + $0x282]]
    %v735 = vstv %s734
    %v736 = vmul.f32 %v735, %v158
    %v737 = vmul.f32 %v735, %v159
    %v738 = vmul.f32 %v735, %v160
    %v739 = vmul.f32 %v735, %v170
    %v740 = vmul.f32 %v735, %v171
    %v741 = vmul.f32 %v735, %v172
    %v742 = vadd.f32 %v728, %v736
    %v743 = vadd.f32 %v729, %v737
    %v744 = vadd.f32 %v730, %v738
    %v745 = vadd.f32 %v731, %v739
    %v746 = vadd.f32 %v732, %v740
    %v747 = vadd.f32 %v733, %v741
    %s748 = sld [smem:[#allocation3 + $0x283]]
    %v749 = vstv %s748
    %v750 = vmul.f32 %v749, %v161
    %v751 = vmul.f32 %v749, %v162
    %v752 = vmul.f32 %v749, %v163
    %v753 = vmul.f32 %v749, %v173
    %v754 = vmul.f32 %v749, %v174
    %v755 = vmul.f32 %v749, %v175
    %v756 = vadd.f32 %v742, %v750
    %v757 = vadd.f32 %v743, %v751
    %v758 = vadd.f32 %v744, %v752
    %v759 = vadd.f32 %v745, %v753
    %v760 = vadd.f32 %v746, %v754
    %v761 = vadd.f32 %v747, %v755
    %v762 = vmul.f32 %v756, 0.5
    %v763 = vmul.f32 %v757, 0.5
    %v764 = vmul.f32 %v758, 0.5
    %v765 = vmul.f32 %v759, 0.5
    %v766 = vmul.f32 %v760, 0.5
    %v767 = vmul.f32 %v761, 0.5
    %v768 = vtanh.pop %v762
    %v769 = vtanh.pop %v763
    %v770 = vtanh.pop %v764
    %v771 = vtanh.pop %v765
    %v772 = vtanh.pop %v766
    %v773 = vtanh.pop %v767
    %v774 = vmul.f32 %v768, 0.5
    %v775 = vmul.f32 %v769, 0.5
    %v776 = vmul.f32 %v770, 0.5
    %v777 = vmul.f32 %v771, 0.5
    %v778 = vmul.f32 %v772, 0.5
    %v779 = vmul.f32 %v773, 0.5
    %v780 = vadd.f32 %v774, 0.5
    %v781 = vadd.f32 %v775, 0.5
    %v782 = vadd.f32 %v776, 0.5
    %v783 = vadd.f32 %v777, 0.5
    %v784 = vadd.f32 %v778, 0.5
    %v785 = vadd.f32 %v779, 0.5
    %v786 = vadd.f32 %v780, %v191
    %v787 = vadd.f32 %v781, %v192
    %v788 = vadd.f32 %v782, %v193
    %v789 = vadd.f32 %v783, %v218
    %v790 = vadd.f32 %v784, %v219
    %v791 = vadd.f32 %v785, %v220
    %s792 = scalar_lea.vmem %s3, 120
    %793 = vst.msk [vmem:[%s792] sm:$0xff] %vm29, %v786
    %794 = vst.msk [vmem:[%s792 + $0x8] sm:$0xff] %vm29, %v787
    %795 = vst.msk [vmem:[%s792 + $0x10] sm:$0x3] %vm32, %v788
    %796 = vst.msk [vmem:[%s792 + $0xd8] sm:$0xff] %vm29, %v789
    %797 = vst.msk [vmem:[%s792 + $0xe0] sm:$0xff] %vm29, %v790
    %798 = vst.msk [vmem:[%s792 + $0xe8] sm:$0x3] %vm32, %v791
    %s799 = sld [smem:[#allocation3 + $0x304]]
    %v800 = vstv %s799
    %s801 = sld [smem:[#allocation3 + $0x300]]
    %v802 = vstv %s801
    %v803 = vmul.f32 %v802, %v152
    %v804 = vmul.f32 %v802, %v153
    %v805 = vmul.f32 %v802, %v154
    %v806 = vmul.f32 %v802, %v164
    %v807 = vmul.f32 %v802, %v165
    %v808 = vmul.f32 %v802, %v166
    %v809 = vadd.f32 %v800, %v803
    %v810 = vadd.f32 %v800, %v804
    %v811 = vadd.f32 %v800, %v805
    %v812 = vadd.f32 %v800, %v806
    %v813 = vadd.f32 %v800, %v807
    %v814 = vadd.f32 %v800, %v808
    %s815 = sld [smem:[#allocation3 + $0x301]]
    %v816 = vstv %s815
    %v817 = vmul.f32 %v816, %v155
    %v818 = vmul.f32 %v816, %v156
    %v819 = vmul.f32 %v816, %v157
    %v820 = vmul.f32 %v816, %v167
    %v821 = vmul.f32 %v816, %v168
    %v822 = vmul.f32 %v816, %v169
    %v823 = vadd.f32 %v809, %v817
    %v824 = vadd.f32 %v810, %v818
    %v825 = vadd.f32 %v811, %v819
    %v826 = vadd.f32 %v812, %v820
    %v827 = vadd.f32 %v813, %v821
    %v828 = vadd.f32 %v814, %v822
    %s829 = sld [smem:[#allocation3 + $0x302]]
    %v830 = vstv %s829
    %v831 = vmul.f32 %v830, %v158
    %v832 = vmul.f32 %v830, %v159
    %v833 = vmul.f32 %v830, %v160
    %v834 = vmul.f32 %v830, %v170
    %v835 = vmul.f32 %v830, %v171
    %v836 = vmul.f32 %v830, %v172
    %v837 = vadd.f32 %v823, %v831
    %v838 = vadd.f32 %v824, %v832
    %v839 = vadd.f32 %v825, %v833
    %v840 = vadd.f32 %v826, %v834
    %v841 = vadd.f32 %v827, %v835
    %v842 = vadd.f32 %v828, %v836
    %s843 = sld [smem:[#allocation3 + $0x303]]
    %v844 = vstv %s843
    %v845 = vmul.f32 %v844, %v161
    %v846 = vmul.f32 %v844, %v162
    %v847 = vmul.f32 %v844, %v163
    %v848 = vmul.f32 %v844, %v173
    %v849 = vmul.f32 %v844, %v174
    %v850 = vmul.f32 %v844, %v175
    %v851 = vadd.f32 %v837, %v845
    %v852 = vadd.f32 %v838, %v846
    %v853 = vadd.f32 %v839, %v847
    %v854 = vadd.f32 %v840, %v848
    %v855 = vadd.f32 %v841, %v849
    %v856 = vadd.f32 %v842, %v850
    %v857 = vmul.f32 %v851, 0.5
    %v858 = vmul.f32 %v852, 0.5
    %v859 = vmul.f32 %v853, 0.5
    %v860 = vmul.f32 %v854, 0.5
    %v861 = vmul.f32 %v855, 0.5
    %v862 = vmul.f32 %v856, 0.5
    %v863 = vtanh.pop %v857
    %v864 = vtanh.pop %v858
    %v865 = vtanh.pop %v859
    %v866 = vtanh.pop %v860
    %v867 = vtanh.pop %v861
    %v868 = vtanh.pop %v862
    %v869 = vmul.f32 %v863, 0.5
    %v870 = vmul.f32 %v864, 0.5
    %v871 = vmul.f32 %v865, 0.5
    %v872 = vmul.f32 %v866, 0.5
    %v873 = vmul.f32 %v867, 0.5
    %v874 = vmul.f32 %v868, 0.5
    %v875 = vadd.f32 %v869, 0.5
    %v876 = vadd.f32 %v870, 0.5
    %v877 = vadd.f32 %v871, 0.5
    %v878 = vadd.f32 %v872, 0.5
    %v879 = vadd.f32 %v873, 0.5
    %v880 = vadd.f32 %v874, 0.5
    %v881 = vadd.f32 %v875, %v194
    %v882 = vadd.f32 %v876, %v195
    %v883 = vadd.f32 %v877, %v196
    %v884 = vadd.f32 %v878, %v221
    %v885 = vadd.f32 %v879, %v222
    %v886 = vadd.f32 %v880, %v223
    %s887 = scalar_lea.vmem %s3, 144
    %888 = vst.msk [vmem:[%s887] sm:$0xff] %vm29, %v881
    %889 = vst.msk [vmem:[%s887 + $0x8] sm:$0xff] %vm29, %v882
    %890 = vst.msk [vmem:[%s887 + $0x10] sm:$0x3] %vm32, %v883
    %891 = vst.msk [vmem:[%s887 + $0xd8] sm:$0xff] %vm29, %v884
    %892 = vst.msk [vmem:[%s887 + $0xe0] sm:$0xff] %vm29, %v885
    %893 = vst.msk [vmem:[%s887 + $0xe8] sm:$0x3] %vm32, %v886
    %s894 = sld [smem:[#allocation3 + $0x384]]
    %v895 = vstv %s894
    %s896 = sld [smem:[#allocation3 + $0x380]]
    %v897 = vstv %s896
    %v898 = vmul.f32 %v897, %v152
    %v899 = vmul.f32 %v897, %v153
    %v900 = vmul.f32 %v897, %v154
    %v901 = vmul.f32 %v897, %v164
    %v902 = vmul.f32 %v897, %v165
    %v903 = vmul.f32 %v897, %v166
    %v904 = vadd.f32 %v895, %v898
    %v905 = vadd.f32 %v895, %v899
    %v906 = vadd.f32 %v895, %v900
    %v907 = vadd.f32 %v895, %v901
    %v908 = vadd.f32 %v895, %v902
    %v909 = vadd.f32 %v895, %v903
    %s910 = sld [smem:[#allocation3 + $0x381]]
    %v911 = vstv %s910
    %v912 = vmul.f32 %v911, %v155
    %v913 = vmul.f32 %v911, %v156
    %v914 = vmul.f32 %v911, %v157
    %v915 = vmul.f32 %v911, %v167
    %v916 = vmul.f32 %v911, %v168
    %v917 = vmul.f32 %v911, %v169
    %v918 = vadd.f32 %v904, %v912
    %v919 = vadd.f32 %v905, %v913
    %v920 = vadd.f32 %v906, %v914
    %v921 = vadd.f32 %v907, %v915
    %v922 = vadd.f32 %v908, %v916
    %v923 = vadd.f32 %v909, %v917
    %s924 = sld [smem:[#allocation3 + $0x382]]
    %v925 = vstv %s924
    %v926 = vmul.f32 %v925, %v158
    %v927 = vmul.f32 %v925, %v159
    %v928 = vmul.f32 %v925, %v160
    %v929 = vmul.f32 %v925, %v170
    %v930 = vmul.f32 %v925, %v171
    %v931 = vmul.f32 %v925, %v172
    %v932 = vadd.f32 %v918, %v926
    %v933 = vadd.f32 %v919, %v927
    %v934 = vadd.f32 %v920, %v928
    %v935 = vadd.f32 %v921, %v929
    %v936 = vadd.f32 %v922, %v930
    %v937 = vadd.f32 %v923, %v931
    %s938 = sld [smem:[#allocation3 + $0x383]]
    %v939 = vstv %s938
    %v940 = vmul.f32 %v939, %v161
    %v941 = vmul.f32 %v939, %v162
    %v942 = vmul.f32 %v939, %v163
    %v943 = vmul.f32 %v939, %v173
    %v944 = vmul.f32 %v939, %v174
    %v945 = vmul.f32 %v939, %v175
    %v946 = vadd.f32 %v932, %v940
    %v947 = vadd.f32 %v933, %v941
    %v948 = vadd.f32 %v934, %v942
    %v949 = vadd.f32 %v935, %v943
    %v950 = vadd.f32 %v936, %v944
    %v951 = vadd.f32 %v937, %v945
    %v952 = vmul.f32 %v946, 0.5
    %v953 = vmul.f32 %v947, 0.5
    %v954 = vmul.f32 %v948, 0.5
    %v955 = vmul.f32 %v949, 0.5
    %v956 = vmul.f32 %v950, 0.5
    %v957 = vmul.f32 %v951, 0.5
    %v958 = vtanh.pop %v952
    %v959 = vtanh.pop %v953
    %v960 = vtanh.pop %v954
    %v961 = vtanh.pop %v955
    %v962 = vtanh.pop %v956
    %v963 = vtanh.pop %v957
    %v964 = vmul.f32 %v958, 0.5
    %v965 = vmul.f32 %v959, 0.5
    %v966 = vmul.f32 %v960, 0.5
    %v967 = vmul.f32 %v961, 0.5
    %v968 = vmul.f32 %v962, 0.5
    %v969 = vmul.f32 %v963, 0.5
    %v970 = vadd.f32 %v964, 0.5
    %v971 = vadd.f32 %v965, 0.5
    %v972 = vadd.f32 %v966, 0.5
    %v973 = vadd.f32 %v967, 0.5
    %v974 = vadd.f32 %v968, 0.5
    %v975 = vadd.f32 %v969, 0.5
    %v976 = vadd.f32 %v970, %v197
    %v977 = vadd.f32 %v971, %v198
    %v978 = vadd.f32 %v972, %v199
    %v979 = vadd.f32 %v973, %v224
    %v980 = vadd.f32 %v974, %v225
    %v981 = vadd.f32 %v975, %v226
    %s982 = scalar_lea.vmem %s3, 168
    %983 = vst.msk [vmem:[%s982] sm:$0xff] %vm29, %v976
    %984 = vst.msk [vmem:[%s982 + $0x8] sm:$0xff] %vm29, %v977
    %985 = vst.msk [vmem:[%s982 + $0x10] sm:$0x3] %vm32, %v978
    %986 = vst.msk [vmem:[%s982 + $0xd8] sm:$0xff] %vm29, %v979
    %987 = vst.msk [vmem:[%s982 + $0xe0] sm:$0xff] %vm29, %v980
    %988 = vst.msk [vmem:[%s982 + $0xe8] sm:$0x3] %vm32, %v981
    %s989 = sld [smem:[#allocation3 + $0x404]]
    %v990 = vstv %s989
    %s991 = sld [smem:[#allocation3 + $0x400]]
    %v992 = vstv %s991
    %v993 = vmul.f32 %v992, %v152
    %v994 = vmul.f32 %v992, %v153
    %v995 = vmul.f32 %v992, %v154
    %v996 = vmul.f32 %v992, %v164
    %v997 = vmul.f32 %v992, %v165
    %v998 = vmul.f32 %v992, %v166
    %v999 = vadd.f32 %v990, %v993
    %v1000 = vadd.f32 %v990, %v994
    %v1001 = vadd.f32 %v990, %v995
    %v1002 = vadd.f32 %v990, %v996
    %v1003 = vadd.f32 %v990, %v997
    %v1004 = vadd.f32 %v990, %v998
    %s1005 = sld [smem:[#allocation3 + $0x401]]
    %v1006 = vstv %s1005
    %v1007 = vmul.f32 %v1006, %v155
    %v1008 = vmul.f32 %v1006, %v156
    %v1009 = vmul.f32 %v1006, %v157
    %v1010 = vmul.f32 %v1006, %v167
    %v1011 = vmul.f32 %v1006, %v168
    %v1012 = vmul.f32 %v1006, %v169
    %v1013 = vadd.f32 %v999, %v1007
    %v1014 = vadd.f32 %v1000, %v1008
    %v1015 = vadd.f32 %v1001, %v1009
    %v1016 = vadd.f32 %v1002, %v1010
    %v1017 = vadd.f32 %v1003, %v1011
    %v1018 = vadd.f32 %v1004, %v1012
    %s1019 = sld [smem:[#allocation3 + $0x402]]
    %v1020 = vstv %s1019
    %v1021 = vmul.f32 %v1020, %v158
    %v1022 = vmul.f32 %v1020, %v159
    %v1023 = vmul.f32 %v1020, %v160
    %v1024 = vmul.f32 %v1020, %v170
    %v1025 = vmul.f32 %v1020, %v171
    %v1026 = vmul.f32 %v1020, %v172
    %v1027 = vadd.f32 %v1013, %v1021
    %v1028 = vadd.f32 %v1014, %v1022
    %v1029 = vadd.f32 %v1015, %v1023
    %v1030 = vadd.f32 %v1016, %v1024
    %v1031 = vadd.f32 %v1017, %v1025
    %v1032 = vadd.f32 %v1018, %v1026
    %s1033 = sld [smem:[#allocation3 + $0x403]]
    %v1034 = vstv %s1033
    %v1035 = vmul.f32 %v1034, %v161
    %v1036 = vmul.f32 %v1034, %v162
    %v1037 = vmul.f32 %v1034, %v163
    %v1038 = vmul.f32 %v1034, %v173
    %v1039 = vmul.f32 %v1034, %v174
    %v1040 = vmul.f32 %v1034, %v175
    %v1041 = vadd.f32 %v1027, %v1035
    %v1042 = vadd.f32 %v1028, %v1036
    %v1043 = vadd.f32 %v1029, %v1037
    %v1044 = vadd.f32 %v1030, %v1038
    %v1045 = vadd.f32 %v1031, %v1039
    %v1046 = vadd.f32 %v1032, %v1040
    %v1047 = vmul.f32 %v1041, 0.5
    %v1048 = vmul.f32 %v1042, 0.5
    %v1049 = vmul.f32 %v1043, 0.5
    %v1050 = vmul.f32 %v1044, 0.5
    %v1051 = vmul.f32 %v1045, 0.5
    %v1052 = vmul.f32 %v1046, 0.5
    %v1053 = vtanh.pop %v1047
    %v1054 = vtanh.pop %v1048
    %v1055 = vtanh.pop %v1049
    %v1056 = vtanh.pop %v1050
    %v1057 = vtanh.pop %v1051
    %v1058 = vtanh.pop %v1052
    %v1059 = vmul.f32 %v1053, 0.5
    %v1060 = vmul.f32 %v1054, 0.5
    %v1061 = vmul.f32 %v1055, 0.5
    %v1062 = vmul.f32 %v1056, 0.5
    %v1063 = vmul.f32 %v1057, 0.5
    %v1064 = vmul.f32 %v1058, 0.5
    %v1065 = vadd.f32 %v1059, 0.5
    %v1066 = vadd.f32 %v1060, 0.5
    %v1067 = vadd.f32 %v1061, 0.5
    %v1068 = vadd.f32 %v1062, 0.5
    %v1069 = vadd.f32 %v1063, 0.5
    %v1070 = vadd.f32 %v1064, 0.5
    %v1071 = vadd.f32 %v1065, %v200
    %v1072 = vadd.f32 %v1066, %v201
    %v1073 = vadd.f32 %v1067, %v202
    %v1074 = vadd.f32 %v1068, %v227
    %v1075 = vadd.f32 %v1069, %v228
    %v1076 = vadd.f32 %v1070, %v229
    %s1077 = scalar_lea.vmem %s3, 192
    %1078 = vst.msk [vmem:[%s1077] sm:$0xff] %vm29, %v1071
    %1079 = vst.msk [vmem:[%s1077 + $0x8] sm:$0xff] %vm29, %v1072
    %1080 = vst.msk [vmem:[%s1077 + $0x10] sm:$0x3] %vm32, %v1073
    %1081 = vst.msk [vmem:[%s1077 + $0xd8] sm:$0xff] %vm29, %v1074
    %1082 = vst.msk [vmem:[%s1077 + $0xe0] sm:$0xff] %vm29, %v1075
    %1083 = vst.msk [vmem:[%s1077 + $0xe8] sm:$0x3] %vm32, %v1076
    // Predicated region
    $region18: #{conv1x1_pad1_sigmoid_add.1} parent=1 // pred_check
      _
    $region19: #{conv1x1_pad1_sigmoid_add.1} parent=1 // pred_check_branch
      %1085 = sbr.rel (0) target = $region21
    $region20: #{conv1x1_pad1_sigmoid_add.1} parent=1 // pred_region
      _
    $region21: #{conv1x1_pad1_sigmoid_add.1} parent=1 // pred_fallthru
      _
    // Predicated region
    $region22: #{conv1x1_pad1_sigmoid_add.1} parent=1 // pred_check
      _
    $region23: #{conv1x1_pad1_sigmoid_add.1} parent=1 // pred_check_branch
      %1087 = sbr.rel (0) target = $region25
    $region24: #{conv1x1_pad1_sigmoid_add.1} parent=1 // pred_region
      _
    $region25: #{conv1x1_pad1_sigmoid_add.1} parent=1 // pred_fallthru
      _
    %1088 = vsyncpa [#allocation4], 1

</llo_original>
